<compile_context>
chip_gen: v6e
topology: v6e:2x2x1
jax: 0.10.0
libtpu: 0.0.40
codegen_flags: <defaults>
</compile_context>

<pallas_src>
import jax
import jax.numpy as jnp
import numpy as np
from jax.experimental import pallas as pl
from jax.experimental.pallas import tpu as pltpu

TINY_NUMBER = 1e-6
LANE = 128
SUBLANE = 8
_VMEM_LIMIT = 32 * 1024 * 1024   # <= scoped VMEM on v5e/v6e/v7x


def _hdr_scale(x):
    return x / (x + 1.0)


def _round_up(x, m):
    return (x + m - 1) // m * m


# ---------------------------------------------------------------------------
# Kernel 1: direct hdr-L1 partial sums over lane-dense [tile_rows, 128] tiles.
#   a = rgb * (empty_mask * gt_mask),  b = gt_img * gt_mask   (masks pre-broadcast)
#   |hdr(a) - hdr(b)| = |a - b| / ((a + 1)(b + 1))   for a, b >= 0.
#   Output: per-tile (1, 128) lane partial sums (final reduce done in XLA).
# ---------------------------------------------------------------------------
def _direct_l1_kernel(a_img_ref, b_img_ref, a_msk_ref, b_msk_ref, out_ref):
    a = a_img_ref[...].astype(jnp.float32) * a_msk_ref[...].astype(jnp.float32)
    b = b_img_ref[...].astype(jnp.float32) * b_msk_ref[...].astype(jnp.float32)
    diff = jnp.abs(a - b) / ((a + 1.0) * (b + 1.0))
    out_ref[...] = jnp.sum(diff, axis=0, keepdims=True)           # (1, LANE)


def _direct_l1_sum(rgb, gt_img, empty_mask, gt_mask, *, rows_per_tile=2048):
    B, H, W, C = gt_img.shape
    n = B * H * W * C

    # Lane-dense flat layout, no transpose: NHWC is already contiguous.
    a_img = rgb.reshape(-1)
    b_img = gt_img.reshape(-1)
    a_msk = jnp.broadcast_to(empty_mask * gt_mask, (B, H, W, C)).reshape(-1)
    b_msk = jnp.broadcast_to(gt_mask, (B, H, W, C)).reshape(-1)

    rows = _round_up(pl.cdiv(n, LANE), SUBLANE)
    tile_rows = min(rows_per_tile, rows)          # multiple of 8
    rows_pad = _round_up(rows, tile_rows)
    n_pad = rows_pad * LANE
    num_tiles = rows_pad // tile_rows

    def prep(x):
        if n_pad != n:
            x = jnp.pad(x, (0, n_pad - n))        # zero pad -> contributes 0
        return x.reshape(rows_pad, LANE)

    a_img, b_img, a_msk, b_msk = (prep(x) for x in (a_img, b_img, a_msk, b_msk))

    partials = pl.pallas_call(
        _direct_l1_kernel,
        out_shape=jax.ShapeDtypeStruct((num_tiles, 1, LANE), jnp.float32),
        grid=(num_tiles,),
        in_specs=[pl.BlockSpec((tile_rows, LANE), lambda t: (t, 0))] * 4,
        out_specs=pl.BlockSpec((None, 1, LANE), lambda t: (t, 0, 0)),
        compiler_params=pltpu.CompilerParams(
            dimension_semantics=("parallel",),
            vmem_limit_bytes=_VMEM_LIMIT),
    )(a_img, b_img, a_msk, b_msk)
    return jnp.sum(partials)


# ---------------------------------------------------------------------------
# SegLoss mode=0, two passes tiled over pixels (pixels on the lane axis).
#   pass 1: per-tile partial sums  sum_p(alb[k,p]*seg[s,p])  and  sum_p(seg[s,p])
#   pass 2: per-tile partial L1    sum_{p,k} |alb[k,p]*seg[s,p] - mean[s,k]*seg[s,p]|
# ---------------------------------------------------------------------------
def _make_seg_pass1_kernel(C):
    def kernel(alb_ref, seg_ref, sums_ref):
        seg_t = seg_ref[...].astype(jnp.float32)                   # (classes, TP)
        for k in range(C):
            alb_row = alb_ref[k:k + 1, :].astype(jnp.float32)      # (1, TP)
            sums_ref[:, k:k + 1] = jnp.sum(seg_t * alb_row, axis=1, keepdims=True)
        sums_ref[:, C:C + 1] = jnp.sum(seg_t, axis=1, keepdims=True)
    return kernel


def _make_seg_pass2_kernel(C):
    def kernel(mean_ref, alb_ref, seg_ref, out_ref):
        seg_t = seg_ref[...].astype(jnp.float32)                   # (classes, TP)
        mean = mean_ref[...]                                       # (classes, C)
        total = jnp.zeros_like(seg_t)
        for k in range(C):
            alb_row = alb_ref[k:k + 1, :].astype(jnp.float32)      # (1, TP)
            total = total + jnp.abs(alb_row * seg_t - mean[:, k:k + 1] * seg_t)
        out_ref[...] = jnp.sum(total, axis=1, keepdims=True)       # (classes, 1)
    return kernel


def _seg_l1_sum(albedo, seg_mask, *, lanes_per_tile=8192):
    B, H, W, C = albedo.shape
    classes = seg_mask.shape[0]
    P = B * H * W

    tile_lanes = min(lanes_per_tile, _round_up(P, LANE))   # multiple of 128
    p_pad = _round_up(P, tile_lanes)
    num_tiles = p_pad // tile_lanes

    # Channels-first albedo [C, P] (one small transpose; the block is reused for all
    # classes within a pixel tile), seg stays [classes, P] without channel broadcast.
    alb = jnp.transpose(albedo.reshape(P, C), (1, 0))
    seg = seg_mask.reshape(classes, P)
    if p_pad != P:
        alb = jnp.pad(alb, ((0, 0), (0, p_pad - P)))
        seg = jnp.pad(seg, ((0, 0), (0, p_pad - P)))

    params = pltpu.CompilerParams(dimension_semantics=("parallel",),
                                  vmem_limit_bytes=_VMEM_LIMIT)

    # Pass 1: per-tile partial per-class sums.
    sums_parts = pl.pallas_call(
        _make_seg_pass1_kernel(C),
        out_shape=jax.ShapeDtypeStruct((num_tiles, classes, C + 1), jnp.float32),
        grid=(num_tiles,),
        in_specs=[
            pl.BlockSpec((C, tile_lanes), lambda t: (0, t)),
            pl.BlockSpec((classes, tile_lanes), lambda t: (0, t)),
        ],
        out_specs=pl.BlockSpec((None, classes, C + 1), lambda t: (t, 0, 0)),
        compiler_params=params,
    )(alb, seg)
    sums = jnp.sum(sums_parts, axis=0)                             # (classes, C+1)
    mean = sums[:, :C] / (sums[:, C:C + 1] + TINY_NUMBER)          # (classes, C)

    # Pass 2: per-tile partial L1 sums against the finalized per-class means.
    parts = pl.pallas_call(
        _make_seg_pass2_kernel(C),
        out_shape=jax.ShapeDtypeStruct((num_tiles, classes, 1), jnp.float32),
        grid=(num_tiles,),
        in_specs=[
            pl.BlockSpec((classes, C), lambda t: (0, 0)),          # resident, tiny
            pl.BlockSpec((C, tile_lanes), lambda t: (0, t)),
            pl.BlockSpec((classes, tile_lanes), lambda t: (0, t)),
        ],
        out_specs=pl.BlockSpec((None, classes, 1), lambda t: (t, 0, 0)),
        compiler_params=params,
    )(mean, alb, seg)
    return jnp.sum(parts)


# ---------------------------------------------------------------------------
# Wrapper: RenderLoss(loss_type='L1').forward(..., stage=0)
# ---------------------------------------------------------------------------
def render_loss_stage0(gt_img, rgb, empty_mask, gt_mask, albedo, seg_mask,
                       floor_max_mask=None):
    B, H, W, C = gt_img.shape
    classes = seg_mask.shape[0]

    direct_sum = _direct_l1_sum(rgb, gt_img, empty_mask, gt_mask)
    direct = direct_sum / float(B * H * W * C)                     # L1 mean

    seg_sum = _seg_l1_sum(albedo, seg_mask)
    seg_loss = seg_sum / float(classes * B * H * W * C) * 20.0     # SegLoss_weight=1, *20

    return direct + seg_loss, seg_loss


# ---------------------------------------------------------------------------
# Pure-JAX reference (mirrors the PyTorch code) for a correctness check.
# ---------------------------------------------------------------------------
def render_loss_stage0_ref(gt_img, rgb, empty_mask, gt_mask, albedo, seg_mask):
    B, H, W, C = gt_img.shape
    classes = seg_mask.shape[0]
    pred = rgb * empty_mask
    direct = jnp.mean(jnp.abs(_hdr_scale(pred * gt_mask) - _hdr_scale(gt_img * gt_mask)))

    seg = seg_mask.reshape(classes, B, H * W, 1)
    img_segs = albedo.reshape(B, H * W, C)[None]                   # (1,B,HW,C) broadcast
    masked = img_segs * seg                                        # (classes,B,HW,C)
    mean_img = (masked.reshape(classes, -1, C).sum(axis=1, keepdims=True)
                / (seg.reshape(classes, -1, 1).sum(axis=1, keepdims=True) + TINY_NUMBER))
    seg_loss = jnp.mean(jnp.abs(masked - mean_img[:, None] * seg)) * 20.0
    return direct + seg_loss, seg_loss


if __name__ == "__main__":
    key = jax.random.PRNGKey(0)
    k1, k2, k3, k4, k5, k6, k7 = jax.random.split(key, 7)

    B, H, W, C = 6, 16, 16, 3
    CLASSES = 8

    gt_img = jax.random.uniform(k1, (B, H, W, C), jnp.float32)
    rgb = jax.random.uniform(k2, (B, H, W, C), jnp.float32)
    albedo = jax.random.uniform(k3, (B, H, W, C), jnp.float32)
    empty_mask = jax.random.bernoulli(k4, 0.8, (B, H, W, 1)).astype(jnp.float32)
    gt_mask = jax.random.bernoulli(k5, 0.9, (B, H, W, 1)).astype(jnp.float32)
    seg_mask = jax.random.bernoulli(k6, 0.3, (CLASSES, B, H, W, 1)).astype(jnp.float32)
    floor_max_mask = jax.random.bernoulli(k7, 0.2, (CLASSES, B, H, W, 1)).astype(jnp.float32)

    loss_fn = jax.jit(render_loss_stage0)
    total, seg_loss = loss_fn(gt_img, rgb, empty_mask, gt_mask,
                              albedo, seg_mask, floor_max_mask)
    total = jax.block_until_ready(total)
    seg_loss = jax.block_until_ready(seg_loss)

    ref_total, ref_seg = render_loss_stage0_ref(gt_img, rgb, empty_mask, gt_mask,
                                                albedo, seg_mask)
    np.testing.assert_allclose(np.asarray(total), np.asarray(ref_total),
                               rtol=1e-4, atol=1e-5)
    np.testing.assert_allclose(np.asarray(seg_loss), np.asarray(ref_seg),
                               rtol=1e-4, atol=1e-5)

    print("KERNEL_OK")
</pallas_src>

<mosaic_0001>
module attributes {stable_mosaic.version = 11 : i64} {
  func.func @kernel(%arg0: i32, %arg1: memref<3x1536xf32, #tpu.memory_space<vmem>>, %arg2: memref<8x1536xf32, #tpu.memory_space<vmem>>, %arg3: memref<1x8x4xf32, #tpu.memory_space<vmem>>) attributes {dimension_semantics = [#tpu.dimension_semantics<parallel>], iteration_bounds = array<i64: 1>, scalar_prefetch = 0 : i64, scratch_operands = 0 : i64, tpu.core_type = #tpu.core_type<tc>, window_params = [{transform_indices = @transform_0, window_bounds = array<i64: 3, 1536>}, {transform_indices = @transform_1, window_bounds = array<i64: 8, 1536>}, {transform_indices = @transform_2, window_bounds = array<i64: 1, 8, 4>}]} {
    %c0 = arith.constant 0 : index
    %c0_0 = arith.constant 0 : index
    %0 = vector.load %arg2[%c0, %c0_0] : memref<8x1536xf32, #tpu.memory_space<vmem>>, vector<8x1536xf32>
    %c0_1 = arith.constant 0 : index
    %c0_2 = arith.constant 0 : index
    %1 = vector.load %arg1[%c0_1, %c0_2] : memref<3x1536xf32, #tpu.memory_space<vmem>>, vector<1x1536xf32>
    %2 = vector.broadcast %1 : vector<1x1536xf32> to vector<8x1536xf32>
    %3 = arith.mulf %0, %2 : vector<8x1536xf32>
    %cst = arith.constant dense<0.000000e+00> : vector<8xf32>
    %4 = vector.multi_reduction <add>, %3, %cst [1] : vector<8x1536xf32> to vector<8xf32>
    %5 = vector.shape_cast %4 : vector<8xf32> to vector<8x1xf32>
    %c0_3 = arith.constant 0 : index
    %c0_4 = arith.constant 0 : index
    %c0_5 = arith.constant 0 : index
    %6 = vector.load %arg3[%c0_3, %c0_4, %c0_5] : memref<1x8x4xf32, #tpu.memory_space<vmem>>, vector<1x8x1xf32>
    %7 = vector.shape_cast %6 : vector<1x8x1xf32> to vector<8x1xf32>
    %8 = vector.shape_cast %5 : vector<8x1xf32> to vector<1x8x1xf32>
    tpu.vector_store %arg3[%c0_3, %c0_4, %c0_5], %8 {strides = array<i32>} : memref<1x8x4xf32, #tpu.memory_space<vmem>>, vector<1x8x1xf32>,
    %c1 = arith.constant 1 : index
    %c0_6 = arith.constant 0 : index
    %9 = vector.load %arg1[%c1, %c0_6] : memref<3x1536xf32, #tpu.memory_space<vmem>>, vector<1x1536xf32>
    %10 = vector.broadcast %9 : vector<1x1536xf32> to vector<8x1536xf32>
    %11 = arith.mulf %0, %10 : vector<8x1536xf32>
    %cst_7 = arith.constant dense<0.000000e+00> : vector<8xf32>
    %12 = vector.multi_reduction <add>, %11, %cst_7 [1] : vector<8x1536xf32> to vector<8xf32>
    %13 = vector.shape_cast %12 : vector<8xf32> to vector<8x1xf32>
    %c0_8 = arith.constant 0 : index
    %c0_9 = arith.constant 0 : index
    %c1_10 = arith.constant 1 : index
    %14 = vector.load %arg3[%c0_8, %c0_9, %c1_10] : memref<1x8x4xf32, #tpu.memory_space<vmem>>, vector<1x8x1xf32>
    %15 = vector.shape_cast %14 : vector<1x8x1xf32> to vector<8x1xf32>
    %16 = vector.shape_cast %13 : vector<8x1xf32> to vector<1x8x1xf32>
    tpu.vector_store %arg3[%c0_8, %c0_9, %c1_10], %16 {strides = array<i32>} : memref<1x8x4xf32, #tpu.memory_space<vmem>>, vector<1x8x1xf32>,
    %c2 = arith.constant 2 : index
    %c0_11 = arith.constant 0 : index
    %17 = vector.load %arg1[%c2, %c0_11] : memref<3x1536xf32, #tpu.memory_space<vmem>>, vector<1x1536xf32>
    %18 = vector.broadcast %17 : vector<1x1536xf32> to vector<8x1536xf32>
    %19 = arith.mulf %0, %18 : vector<8x1536xf32>
    %cst_12 = arith.constant dense<0.000000e+00> : vector<8xf32>
    %20 = vector.multi_reduction <add>, %19, %cst_12 [1] : vector<8x1536xf32> to vector<8xf32>
    %21 = vector.shape_cast %20 : vector<8xf32> to vector<8x1xf32>
    %c0_13 = arith.constant 0 : index
    %c0_14 = arith.constant 0 : index
    %c2_15 = arith.constant 2 : index
    %22 = vector.load %arg3[%c0_13, %c0_14, %c2_15] : memref<1x8x4xf32, #tpu.memory_space<vmem>>, vector<1x8x1xf32>
    %23 = vector.shape_cast %22 : vector<1x8x1xf32> to vector<8x1xf32>
    %24 = vector.shape_cast %21 : vector<8x1xf32> to vector<1x8x1xf32>
    tpu.vector_store %arg3[%c0_13, %c0_14, %c2_15], %24 {strides = array<i32>} : memref<1x8x4xf32, #tpu.memory_space<vmem>>, vector<1x8x1xf32>,
    %cst_16 = arith.constant dense<0.000000e+00> : vector<8xf32>
    %25 = vector.multi_reduction <add>, %0, %cst_16 [1] : vector<8x1536xf32> to vector<8xf32>
    %26 = vector.shape_cast %25 : vector<8xf32> to vector<8x1xf32>
    %c0_17 = arith.constant 0 : index
    %c0_18 = arith.constant 0 : index
    %c3 = arith.constant 3 : index
    %27 = vector.load %arg3[%c0_17, %c0_18, %c3] : memref<1x8x4xf32, #tpu.memory_space<vmem>>, vector<1x8x1xf32>
    %28 = vector.shape_cast %27 : vector<1x8x1xf32> to vector<8x1xf32>
    %29 = vector.shape_cast %26 : vector<8x1xf32> to vector<1x8x1xf32>
    tpu.vector_store %arg3[%c0_17, %c0_18, %c3], %29 {strides = array<i32>} : memref<1x8x4xf32, #tpu.memory_space<vmem>>, vector<1x8x1xf32>,
    return
  }
  func.func @transform_0(%arg0: i32) -> (i32, i32) {
    %c0_i32 = arith.constant 0 : i32
    %c0_i32_0 = arith.constant 0 : i32
    return %c0_i32, %arg0 : i32, i32
  }
  func.func @transform_1(%arg0: i32) -> (i32, i32) {
    %c0_i32 = arith.constant 0 : i32
    %c0_i32_0 = arith.constant 0 : i32
    return %c0_i32, %arg0 : i32, i32
  }
  func.func @transform_2(%arg0: i32) -> (i32, i32, i32) {
    %c0_i32 = arith.constant 0 : i32
    %c0_i32_0 = arith.constant 0 : i32
    %c0_i32_1 = arith.constant 0 : i32
    return %arg0, %c0_i32, %c0_i32_0 : i32, i32, i32
  }
}

module attributes {stable_mosaic.version = 11 : i64} {
  func.func @kernel(%arg0: i32, %arg1: memref<8x3xf32, #tpu.memory_space<vmem>>, %arg2: memref<3x1536xf32, #tpu.memory_space<vmem>>, %arg3: memref<8x1536xf32, #tpu.memory_space<vmem>>, %arg4: memref<1x8x1xf32, #tpu.memory_space<vmem>>) attributes {dimension_semantics = [#tpu.dimension_semantics<parallel>], iteration_bounds = array<i64: 1>, scalar_prefetch = 0 : i64, scratch_operands = 0 : i64, tpu.core_type = #tpu.core_type<tc>, window_params = [{pipeline_mode = #tpu.pipeline_mode<synchronous>, transform_indices = @transform_0, window_bounds = array<i64: 8, 3>}, {transform_indices = @transform_1, window_bounds = array<i64: 3, 1536>}, {transform_indices = @transform_2, window_bounds = array<i64: 8, 1536>}, {transform_indices = @transform_3, window_bounds = array<i64: 1, 8, 1>}]} {
    %c0 = arith.constant 0 : index
    %c0_0 = arith.constant 0 : index
    %0 = vector.load %arg3[%c0, %c0_0] : memref<8x1536xf32, #tpu.memory_space<vmem>>, vector<8x1536xf32>
    %c0_1 = arith.constant 0 : index
    %c0_2 = arith.constant 0 : index
    %1 = vector.load %arg1[%c0_1, %c0_2] : memref<8x3xf32, #tpu.memory_space<vmem>>, vector<8x3xf32>
    %cst = arith.constant 0.000000e+00 : f32
    %2 = vector.broadcast %cst : f32 to vector<8x1536xf32>
    %c0_3 = arith.constant 0 : index
    %c0_4 = arith.constant 0 : index
    %3 = vector.load %arg2[%c0_3, %c0_4] : memref<3x1536xf32, #tpu.memory_space<vmem>>, vector<1x1536xf32>
    %4 = vector.broadcast %3 : vector<1x1536xf32> to vector<8x1536xf32>
    %5 = arith.mulf %4, %0 : vector<8x1536xf32>
    %6 = vector.extract_strided_slice %1 {offsets = [0, 0], sizes = [8, 1], strides = [1, 1]} : vector<8x3xf32> to vector<8x1xf32>
    %7 = vector.broadcast %6 : vector<8x1xf32> to vector<8x1536xf32>
    %8 = arith.mulf %7, %0 : vector<8x1536xf32>
    %9 = arith.subf %5, %8 : vector<8x1536xf32>
    %10 = math.absf %9 : vector<8x1536xf32>
    %11 = arith.addf %2, %10 : vector<8x1536xf32>
    %c1 = arith.constant 1 : index
    %c0_5 = arith.constant 0 : index
    %12 = vector.load %arg2[%c1, %c0_5] : memref<3x1536xf32, #tpu.memory_space<vmem>>, vector<1x1536xf32>
    %13 = vector.broadcast %12 : vector<1x1536xf32> to vector<8x1536xf32>
    %14 = arith.mulf %13, %0 : vector<8x1536xf32>
    %15 = vector.extract_strided_slice %1 {offsets = [0, 1], sizes = [8, 1], strides = [1, 1]} : vector<8x3xf32> to vector<8x1xf32>
    %16 = vector.broadcast %15 : vector<8x1xf32> to vector<8x1536xf32>
    %17 = arith.mulf %16, %0 : vector<8x1536xf32>
    %18 = arith.subf %14, %17 : vector<8x1536xf32>
    %19 = math.absf %18 : vector<8x1536xf32>
    %20 = arith.addf %11, %19 : vector<8x1536xf32>
    %c2 = arith.constant 2 : index
    %c0_6 = arith.constant 0 : index
    %21 = vector.load %arg2[%c2, %c0_6] : memref<3x1536xf32, #tpu.memory_space<vmem>>, vector<1x1536xf32>
    %22 = vector.broadcast %21 : vector<1x1536xf32> to vector<8x1536xf32>
    %23 = arith.mulf %22, %0 : vector<8x1536xf32>
    %24 = vector.extract_strided_slice %1 {offsets = [0, 2], sizes = [8, 1], strides = [1, 1]} : vector<8x3xf32> to vector<8x1xf32>
    %25 = vector.broadcast %24 : vector<8x1xf32> to vector<8x1536xf32>
    %26 = arith.mulf %25, %0 : vector<8x1536xf32>
    %27 = arith.subf %23, %26 : vector<8x1536xf32>
    %28 = math.absf %27 : vector<8x1536xf32>
    %29 = arith.addf %20, %28 : vector<8x1536xf32>
    %cst_7 = arith.constant dense<0.000000e+00> : vector<8xf32>
    %30 = vector.multi_reduction <add>, %29, %cst_7 [1] : vector<8x1536xf32> to vector<8xf32>
    %31 = vector.shape_cast %30 : vector<8xf32> to vector<8x1xf32>
    %c0_8 = arith.constant 0 : index
    %c0_9 = arith.constant 0 : index
    %c0_10 = arith.constant 0 : index
    %32 = vector.load %arg4[%c0_8, %c0_9, %c0_10] : memref<1x8x1xf32, #tpu.memory_space<vmem>>, vector<1x8x1xf32>
    %33 = vector.shape_cast %32 : vector<1x8x1xf32> to vector<8x1xf32>
    %34 = vector.shape_cast %31 : vector<8x1xf32> to vector<1x8x1xf32>
    tpu.vector_store %arg4[%c0_8, %c0_9, %c0_10], %34 {strides = array<i32>} : memref<1x8x1xf32, #tpu.memory_space<vmem>>, vector<1x8x1xf32>,
    return
  }
  func.func @transform_0(%arg0: i32) -> (i32, i32) {
    %c0_i32 = arith.constant 0 : i32
    %c0_i32_0 = arith.constant 0 : i32
    %c0_i32_1 = arith.constant 0 : i32
    return %c0_i32, %c0_i32_0 : i32, i32
  }
  func.func @transform_1(%arg0: i32) -> (i32, i32) {
    %c0_i32 = arith.constant 0 : i32
    %c0_i32_0 = arith.constant 0 : i32
    return %c0_i32, %arg0 : i32, i32
  }
  func.func @transform_2(%arg0: i32) -> (i32, i32) {
    %c0_i32 = arith.constant 0 : i32
    %c0_i32_0 = arith.constant 0 : i32
    return %c0_i32, %arg0 : i32, i32
  }
  func.func @transform_3(%arg0: i32) -> (i32, i32, i32) {
    %c0_i32 = arith.constant 0 : i32
    %c0_i32_0 = arith.constant 0 : i32
    %c0_i32_1 = arith.constant 0 : i32
    return %arg0, %c0_i32, %c0_i32_0 : i32, i32, i32
  }
}

module attributes {stable_mosaic.version = 11 : i64} {
  func.func @_direct_l1_kernel(%arg0: i32, %arg1: memref<40x128xf32, #tpu.memory_space<vmem>>, %arg2: memref<40x128xf32, #tpu.memory_space<vmem>>, %arg3: memref<40x128xf32, #tpu.memory_space<vmem>>, %arg4: memref<40x128xf32, #tpu.memory_space<vmem>>, %arg5: memref<1x1x128xf32, #tpu.memory_space<vmem>>) attributes {dimension_semantics = [#tpu.dimension_semantics<parallel>], iteration_bounds = array<i64: 1>, scalar_prefetch = 0 : i64, scratch_operands = 0 : i64, tpu.core_type = #tpu.core_type<tc>, window_params = [{transform_indices = @transform_0, window_bounds = array<i64: 40, 128>}, {transform_indices = @transform_1, window_bounds = array<i64: 40, 128>}, {transform_indices = @transform_2, window_bounds = array<i64: 40, 128>}, {transform_indices = @transform_3, window_bounds = array<i64: 40, 128>}, {transform_indices = @transform_4, window_bounds = array<i64: 1, 1, 128>}]} {
    %c0 = arith.constant 0 : index
    %c0_0 = arith.constant 0 : index
    %0 = vector.load %arg1[%c0, %c0_0] : memref<40x128xf32, #tpu.memory_space<vmem>>, vector<40x128xf32>
    %c0_1 = arith.constant 0 : index
    %c0_2 = arith.constant 0 : index
    %1 = vector.load %arg3[%c0_1, %c0_2] : memref<40x128xf32, #tpu.memory_space<vmem>>, vector<40x128xf32>
    %2 = arith.mulf %0, %1 : vector<40x128xf32>
    %c0_3 = arith.constant 0 : index
    %c0_4 = arith.constant 0 : index
    %3 = vector.load %arg2[%c0_3, %c0_4] : memref<40x128xf32, #tpu.memory_space<vmem>>, vector<40x128xf32>
    %c0_5 = arith.constant 0 : index
    %c0_6 = arith.constant 0 : index
    %4 = vector.load %arg4[%c0_5, %c0_6] : memref<40x128xf32, #tpu.memory_space<vmem>>, vector<40x128xf32>
    %5 = arith.mulf %3, %4 : vector<40x128xf32>
    %6 = arith.subf %2, %5 : vector<40x128xf32>
    %7 = math.absf %6 : vector<40x128xf32>
    %cst = arith.constant 1.000000e+00 : f32
    %8 = vector.broadcast %cst : f32 to vector<40x128xf32>
    %9 = arith.addf %2, %8 : vector<40x128xf32>
    %cst_7 = arith.constant 1.000000e+00 : f32
    %10 = vector.broadcast %cst_7 : f32 to vector<40x128xf32>
    %11 = arith.addf %5, %10 : vector<40x128xf32>
    %12 = arith.mulf %9, %11 : vector<40x128xf32>
    %13 = arith.divf %7, %12 : vector<40x128xf32>
    %cst_8 = arith.constant dense<0.000000e+00> : vector<128xf32>
    %14 = vector.multi_reduction <add>, %13, %cst_8 [0] : vector<40x128xf32> to vector<128xf32>
    %15 = vector.shape_cast %14 : vector<128xf32> to vector<1x128xf32>
    %c0_9 = arith.constant 0 : index
    %c0_10 = arith.constant 0 : index
    %c0_11 = arith.constant 0 : index
    %16 = vector.load %arg5[%c0_9, %c0_10, %c0_11] : memref<1x1x128xf32, #tpu.memory_space<vmem>>, vector<1x1x128xf32>
    %17 = vector.shape_cast %16 : vector<1x1x128xf32> to vector<1x128xf32>
    %18 = vector.shape_cast %15 : vector<1x128xf32> to vector<1x1x128xf32>
    tpu.vector_store %arg5[%c0_9, %c0_10, %c0_11], %18 {strides = array<i32>} : memref<1x1x128xf32, #tpu.memory_space<vmem>>, vector<1x1x128xf32>,
    return
  }
  func.func @transform_0(%arg0: i32) -> (i32, i32) {
    %c0_i32 = arith.constant 0 : i32
    %c0_i32_0 = arith.constant 0 : i32
    return %arg0, %c0_i32 : i32, i32
  }
  func.func @transform_1(%arg0: i32) -> (i32, i32) {
    %c0_i32 = arith.constant 0 : i32
    %c0_i32_0 = arith.constant 0 : i32
    return %arg0, %c0_i32 : i32, i32
  }
  func.func @transform_2(%arg0: i32) -> (i32, i32) {
    %c0_i32 = arith.constant 0 : i32
    %c0_i32_0 = arith.constant 0 : i32
    return %arg0, %c0_i32 : i32, i32
  }
  func.func @transform_3(%arg0: i32) -> (i32, i32) {
    %c0_i32 = arith.constant 0 : i32
    %c0_i32_0 = arith.constant 0 : i32
    return %arg0, %c0_i32 : i32, i32
  }
  func.func @transform_4(%arg0: i32) -> (i32, i32, i32) {
    %c0_i32 = arith.constant 0 : i32
    %c0_i32_0 = arith.constant 0 : i32
    %c0_i32_1 = arith.constant 0 : i32
    return %arg0, %c0_i32, %c0_i32_0 : i32, i32, i32
  }
}

</mosaic_0001>

<llo_original>
// kernel: mul.2
$region0: #{mul.2}
  #allocation4 [shape = 's32[1]{0}', space=sflag, size = 0x4, scoped, tag = 'scoped memory for mul.2']
  %s0 = inlined_call_operand.hbm [shape: f32[6,16,16,1], index: 0, kind: input, shape index: {}]
  %s1 = inlined_call_operand.hbm [shape: f32[6,16,16,1], index: 1, kind: input, shape index: {}]
  %s2 = inlined_call_operand.vmem [shape: f32[6,16,16,1], index: 2, kind: output, shape index: {}]
  $region1: #{mul.2} parent=0
    #allocation0 [shape = 'u8[49152]{0}', space=vmem, size = 0xc000, scoped, tag = 'operand span for operand 0']
    #allocation1 [shape = 's32[1]{0}', space=sflag, size = 0x4, scoped, tag = 'scoped memory for mul.2']
    #allocation2 [shape = 'u8[49152]{0}', space=vmem, size = 0xc000, scoped, tag = 'operand span for operand 1']
    #allocation3 [shape = 's32[1]{0}', space=sflag, size = 0x4, scoped, tag = 'scoped memory for mul.2']
    %3 = vsyncpa [#allocation1], 0
    %4 = vsyncpa [#allocation3], 0
    %s6 = ssub.s32 1536, 1536
    %7 = vsyncadd [#allocation1], %s6
    %s8 = sshll.u32 [#allocation0], 4
    %s9 = int_to_ptr.vmem [resolvable:$true] %s8
    %14 = dma.hbm_to_vmem [thread:$0]  %s0, 1536, %s9, [#allocation1], 16, 16, 1
    %s16 = ssub.s32 1536, 1536
    %17 = vsyncadd [#allocation3], %s16
    %s18 = sshll.u32 [#allocation2], 4
    %s19 = int_to_ptr.vmem [resolvable:$true] %s18
    %24 = dma.hbm_to_vmem [thread:$0]  %s1, 1536, %s19, [#allocation3], 16, 16, 1
    %25 = dma.done [#allocation1], 1536
    %26 = dma.done [#allocation3], 1536
    %v27 = vld [vmem:[#allocation0] sm:$0x1]
    %v28 = vld [vmem:[#allocation2] sm:$0x1]
    %29 = xla_tuple %v27, %v28
    %30 = xla_tuple %29
    %v31 = vmul.f32 %v27, %v28
    %32 = xla_tuple %v31
    %33 = vst [vmem:[%s2] sm:$0x1] %v31
    %s34 = scalar_lea.vmem [#allocation0], 16
    %v35 = vld [vmem:[%s34] sm:$0x1]
    %s36 = scalar_lea.vmem [#allocation2], 16
    %v37 = vld [vmem:[%s36] sm:$0x1]
    %38 = xla_tuple %v35, %v37
    %39 = xla_tuple %38
    %v40 = vmul.f32 %v35, %v37
    %41 = xla_tuple %v40
    %s42 = scalar_lea.vmem %s2, 16
    %43 = vst [vmem:[%s42] sm:$0x1] %v40
    %s44 = scalar_lea.vmem [#allocation0], 32
    %v45 = vld [vmem:[%s44] sm:$0x1]
    %s46 = scalar_lea.vmem [#allocation2], 32
    %v47 = vld [vmem:[%s46] sm:$0x1]
    %48 = xla_tuple %v45, %v47
    %49 = xla_tuple %48
    %v50 = vmul.f32 %v45, %v47
    %51 = xla_tuple %v50
    %s52 = scalar_lea.vmem %s2, 32
    %53 = vst [vmem:[%s52] sm:$0x1] %v50
    %s54 = scalar_lea.vmem [#allocation0], 48
    %v55 = vld [vmem:[%s54] sm:$0x1]
    %s56 = scalar_lea.vmem [#allocation2], 48
    %v57 = vld [vmem:[%s56] sm:$0x1]
    %58 = xla_tuple %v55, %v57
    %59 = xla_tuple %58
    %v60 = vmul.f32 %v55, %v57
    %61 = xla_tuple %v60
    %s62 = scalar_lea.vmem %s2, 48
    %63 = vst [vmem:[%s62] sm:$0x1] %v60
    %s64 = scalar_lea.vmem [#allocation0], 64
    %v65 = vld [vmem:[%s64] sm:$0x1]
    %s66 = scalar_lea.vmem [#allocation2], 64
    %v67 = vld [vmem:[%s66] sm:$0x1]
    %68 = xla_tuple %v65, %v67
    %69 = xla_tuple %68
    %v70 = vmul.f32 %v65, %v67
    %71 = xla_tuple %v70
    %s72 = scalar_lea.vmem %s2, 64
    %73 = vst [vmem:[%s72] sm:$0x1] %v70
    %s74 = scalar_lea.vmem [#allocation0], 80
    %v75 = vld [vmem:[%s74] sm:$0x1]
    %s76 = scalar_lea.vmem [#allocation2], 80
    %v77 = vld [vmem:[%s76] sm:$0x1]
    %78 = xla_tuple %v75, %v77
    %79 = xla_tuple %78
    %v80 = vmul.f32 %v75, %v77
    %81 = xla_tuple %v80
    %s82 = scalar_lea.vmem %s2, 80
    %83 = vst [vmem:[%s82] sm:$0x1] %v80
    %s84 = scalar_lea.vmem [#allocation0], 1
    %v85 = vld [vmem:[%s84] sm:$0x1]
    %s86 = scalar_lea.vmem [#allocation2], 1
    %v87 = vld [vmem:[%s86] sm:$0x1]
    %88 = xla_tuple %v85, %v87
    %89 = xla_tuple %88
    %v90 = vmul.f32 %v85, %v87
    %91 = xla_tuple %v90
    %s92 = scalar_lea.vmem %s2, 1
    %93 = vst [vmem:[%s92] sm:$0x1] %v90
    %s94 = scalar_lea.vmem [#allocation0], 17
    %v95 = vld [vmem:[%s94] sm:$0x1]
    %s96 = scalar_lea.vmem [#allocation2], 17
    %v97 = vld [vmem:[%s96] sm:$0x1]
    %98 = xla_tuple %v95, %v97
    %99 = xla_tuple %98
    %v100 = vmul.f32 %v95, %v97
    %101 = xla_tuple %v100
    %s102 = scalar_lea.vmem %s2, 17
    %103 = vst [vmem:[%s102] sm:$0x1] %v100
    %s104 = scalar_lea.vmem [#allocation0], 33
    %v105 = vld [vmem:[%s104] sm:$0x1]
    %s106 = scalar_lea.vmem [#allocation2], 33
    %v107 = vld [vmem:[%s106] sm:$0x1]
    %108 = xla_tuple %v105, %v107
    %109 = xla_tuple %108
    %v110 = vmul.f32 %v105, %v107
    %111 = xla_tuple %v110
    %s112 = scalar_lea.vmem %s2, 33
    %113 = vst [vmem:[%s112] sm:$0x1] %v110
    %s114 = scalar_lea.vmem [#allocation0], 49
    %v115 = vld [vmem:[%s114] sm:$0x1]
    %s116 = scalar_lea.vmem [#allocation2], 49
    %v117 = vld [vmem:[%s116] sm:$0x1]
    %118 = xla_tuple %v115, %v117
    %119 = xla_tuple %118
    %v120 = vmul.f32 %v115, %v117
    %121 = xla_tuple %v120
    %s122 = scalar_lea.vmem %s2, 49
    %123 = vst [vmem:[%s122] sm:$0x1] %v120
    %s124 = scalar_lea.vmem [#allocation0], 65
    %v125 = vld [vmem:[%s124] sm:$0x1]
    %s126 = scalar_lea.vmem [#allocation2], 65
    %v127 = vld [vmem:[%s126] sm:$0x1]
    %128 = xla_tuple %v125, %v127
    %129 = xla_tuple %128
    %v130 = vmul.f32 %v125, %v127
    %131 = xla_tuple %v130
    %s132 = scalar_lea.vmem %s2, 65
    %133 = vst [vmem:[%s132] sm:$0x1] %v130
    %s134 = scalar_lea.vmem [#allocation0], 81
    %v135 = vld [vmem:[%s134] sm:$0x1]
    %s136 = scalar_lea.vmem [#allocation2], 81
    %v137 = vld [vmem:[%s136] sm:$0x1]
    %138 = xla_tuple %v135, %v137
    %139 = xla_tuple %138
    %v140 = vmul.f32 %v135, %v137
    %141 = xla_tuple %v140
    %s142 = scalar_lea.vmem %s2, 81
    %143 = vst [vmem:[%s142] sm:$0x1] %v140
    %s144 = scalar_lea.vmem [#allocation0], 2
    %v145 = vld [vmem:[%s144] sm:$0x1]
    %s146 = scalar_lea.vmem [#allocation2], 2
    %v147 = vld [vmem:[%s146] sm:$0x1]
    %148 = xla_tuple %v145, %v147
    %149 = xla_tuple %148
    %v150 = vmul.f32 %v145, %v147
    %151 = xla_tuple %v150
    %s152 = scalar_lea.vmem %s2, 2
    %153 = vst [vmem:[%s152] sm:$0x1] %v150
    %s154 = scalar_lea.vmem [#allocation0], 18
    %v155 = vld [vmem:[%s154] sm:$0x1]
    %s156 = scalar_lea.vmem [#allocation2], 18
    %v157 = vld [vmem:[%s156] sm:$0x1]
    %158 = xla_tuple %v155, %v157
    %159 = xla_tuple %158
    %v160 = vmul.f32 %v155, %v157
    %161 = xla_tuple %v160
    %s162 = scalar_lea.vmem %s2, 18
    %163 = vst [vmem:[%s162] sm:$0x1] %v160
    %s164 = scalar_lea.vmem [#allocation0], 34
    %v165 = vld [vmem:[%s164] sm:$0x1]
    %s166 = scalar_lea.vmem [#allocation2], 34
    %v167 = vld [vmem:[%s166] sm:$0x1]
    %168 = xla_tuple %v165, %v167
    %169 = xla_tuple %168
    %v170 = vmul.f32 %v165, %v167
    %171 = xla_tuple %v170
    %s172 = scalar_lea.vmem %s2, 34
    %173 = vst [vmem:[%s172] sm:$0x1] %v170
    %s174 = scalar_lea.vmem [#allocation0], 50
    %v175 = vld [vmem:[%s174] sm:$0x1]
    %s176 = scalar_lea.vmem [#allocation2], 50
    %v177 = vld [vmem:[%s176] sm:$0x1]
    %178 = xla_tuple %v175, %v177
    %179 = xla_tuple %178
    %v180 = vmul.f32 %v175, %v177
    %181 = xla_tuple %v180
    %s182 = scalar_lea.vmem %s2, 50
    %183 = vst [vmem:[%s182] sm:$0x1] %v180
    %s184 = scalar_lea.vmem [#allocation0], 66
    %v185 = vld [vmem:[%s184] sm:$0x1]
    %s186 = scalar_lea.vmem [#allocation2], 66
    %v187 = vld [vmem:[%s186] sm:$0x1]
    %188 = xla_tuple %v185, %v187
    %189 = xla_tuple %188
    %v190 = vmul.f32 %v185, %v187
    %191 = xla_tuple %v190
    %s192 = scalar_lea.vmem %s2, 66
    %193 = vst [vmem:[%s192] sm:$0x1] %v190
    %s194 = scalar_lea.vmem [#allocation0], 82
    %v195 = vld [vmem:[%s194] sm:$0x1]
    %s196 = scalar_lea.vmem [#allocation2], 82
    %v197 = vld [vmem:[%s196] sm:$0x1]
    %198 = xla_tuple %v195, %v197
    %199 = xla_tuple %198
    %v200 = vmul.f32 %v195, %v197
    %201 = xla_tuple %v200
    %s202 = scalar_lea.vmem %s2, 82
    %203 = vst [vmem:[%s202] sm:$0x1] %v200
    %s204 = scalar_lea.vmem [#allocation0], 3
    %v205 = vld [vmem:[%s204] sm:$0x1]
    %s206 = scalar_lea.vmem [#allocation2], 3
    %v207 = vld [vmem:[%s206] sm:$0x1]
    %208 = xla_tuple %v205, %v207
    %209 = xla_tuple %208
    %v210 = vmul.f32 %v205, %v207
    %211 = xla_tuple %v210
    %s212 = scalar_lea.vmem %s2, 3
    %213 = vst [vmem:[%s212] sm:$0x1] %v210
    %s214 = scalar_lea.vmem [#allocation0], 19
    %v215 = vld [vmem:[%s214] sm:$0x1]
    %s216 = scalar_lea.vmem [#allocation2], 19
    %v217 = vld [vmem:[%s216] sm:$0x1]
    %218 = xla_tuple %v215, %v217
    %219 = xla_tuple %218
    %v220 = vmul.f32 %v215, %v217
    %221 = xla_tuple %v220
    %s222 = scalar_lea.vmem %s2, 19
    %223 = vst [vmem:[%s222] sm:$0x1] %v220
    %s224 = scalar_lea.vmem [#allocation0], 35
    %v225 = vld [vmem:[%s224] sm:$0x1]
    %s226 = scalar_lea.vmem [#allocation2], 35
    %v227 = vld [vmem:[%s226] sm:$0x1]
    %228 = xla_tuple %v225, %v227
    %229 = xla_tuple %228
    %v230 = vmul.f32 %v225, %v227
    %231 = xla_tuple %v230
    %s232 = scalar_lea.vmem %s2, 35
    %233 = vst [vmem:[%s232] sm:$0x1] %v230
    %s234 = scalar_lea.vmem [#allocation0], 51
    %v235 = vld [vmem:[%s234] sm:$0x1]
    %s236 = scalar_lea.vmem [#allocation2], 51
    %v237 = vld [vmem:[%s236] sm:$0x1]
    %238 = xla_tuple %v235, %v237
    %239 = xla_tuple %238
    %v240 = vmul.f32 %v235, %v237
    %241 = xla_tuple %v240
    %s242 = scalar_lea.vmem %s2, 51
    %243 = vst [vmem:[%s242] sm:$0x1] %v240
    %s244 = scalar_lea.vmem [#allocation0], 67
    %v245 = vld [vmem:[%s244] sm:$0x1]
    %s246 = scalar_lea.vmem [#allocation2], 67
    %v247 = vld [vmem:[%s246] sm:$0x1]
    %248 = xla_tuple %v245, %v247
    %249 = xla_tuple %248
    %v250 = vmul.f32 %v245, %v247
    %251 = xla_tuple %v250
    %s252 = scalar_lea.vmem %s2, 67
    %253 = vst [vmem:[%s252] sm:$0x1] %v250
    %s254 = scalar_lea.vmem [#allocation0], 83
    %v255 = vld [vmem:[%s254] sm:$0x1]
    %s256 = scalar_lea.vmem [#allocation2], 83
    %v257 = vld [vmem:[%s256] sm:$0x1]
    %258 = xla_tuple %v255, %v257
    %259 = xla_tuple %258
    %v260 = vmul.f32 %v255, %v257
    %261 = xla_tuple %v260
    %s262 = scalar_lea.vmem %s2, 83
    %263 = vst [vmem:[%s262] sm:$0x1] %v260
    %s264 = scalar_lea.vmem [#allocation0], 4
    %v265 = vld [vmem:[%s264] sm:$0x1]
    %s266 = scalar_lea.vmem [#allocation2], 4
    %v267 = vld [vmem:[%s266] sm:$0x1]
    %268 = xla_tuple %v265, %v267
    %269 = xla_tuple %268
    %v270 = vmul.f32 %v265, %v267
    %271 = xla_tuple %v270
    %s272 = scalar_lea.vmem %s2, 4
    %273 = vst [vmem:[%s272] sm:$0x1] %v270
    %s274 = scalar_lea.vmem [#allocation0], 20
    %v275 = vld [vmem:[%s274] sm:$0x1]
    %s276 = scalar_lea.vmem [#allocation2], 20
    %v277 = vld [vmem:[%s276] sm:$0x1]
    %278 = xla_tuple %v275, %v277
    %279 = xla_tuple %278
    %v280 = vmul.f32 %v275, %v277
    %281 = xla_tuple %v280
    %s282 = scalar_lea.vmem %s2, 20
    %283 = vst [vmem:[%s282] sm:$0x1] %v280
    %s284 = scalar_lea.vmem [#allocation0], 36
    %v285 = vld [vmem:[%s284] sm:$0x1]
    %s286 = scalar_lea.vmem [#allocation2], 36
    %v287 = vld [vmem:[%s286] sm:$0x1]
    %288 = xla_tuple %v285, %v287
    %289 = xla_tuple %288
    %v290 = vmul.f32 %v285, %v287
    %291 = xla_tuple %v290
    %s292 = scalar_lea.vmem %s2, 36
    %293 = vst [vmem:[%s292] sm:$0x1] %v290
    %s294 = scalar_lea.vmem [#allocation0], 52
    %v295 = vld [vmem:[%s294] sm:$0x1]
    %s296 = scalar_lea.vmem [#allocation2], 52
    %v297 = vld [vmem:[%s296] sm:$0x1]
    %298 = xla_tuple %v295, %v297
    %299 = xla_tuple %298
    %v300 = vmul.f32 %v295, %v297
    %301 = xla_tuple %v300
    %s302 = scalar_lea.vmem %s2, 52
    %303 = vst [vmem:[%s302] sm:$0x1] %v300
    %s304 = scalar_lea.vmem [#allocation0], 68
    %v305 = vld [vmem:[%s304] sm:$0x1]
    %s306 = scalar_lea.vmem [#allocation2], 68
    %v307 = vld [vmem:[%s306] sm:$0x1]
    %308 = xla_tuple %v305, %v307
    %309 = xla_tuple %308
    %v310 = vmul.f32 %v305, %v307
    %311 = xla_tuple %v310
    %s312 = scalar_lea.vmem %s2, 68
    %313 = vst [vmem:[%s312] sm:$0x1] %v310
    %s314 = scalar_lea.vmem [#allocation0], 84
    %v315 = vld [vmem:[%s314] sm:$0x1]
    %s316 = scalar_lea.vmem [#allocation2], 84
    %v317 = vld [vmem:[%s316] sm:$0x1]
    %318 = xla_tuple %v315, %v317
    %319 = xla_tuple %318
    %v320 = vmul.f32 %v315, %v317
    %321 = xla_tuple %v320
    %s322 = scalar_lea.vmem %s2, 84
    %323 = vst [vmem:[%s322] sm:$0x1] %v320
    %s324 = scalar_lea.vmem [#allocation0], 5
    %v325 = vld [vmem:[%s324] sm:$0x1]
    %s326 = scalar_lea.vmem [#allocation2], 5
    %v327 = vld [vmem:[%s326] sm:$0x1]
    %328 = xla_tuple %v325, %v327
    %329 = xla_tuple %328
    %v330 = vmul.f32 %v325, %v327
    %331 = xla_tuple %v330
    %s332 = scalar_lea.vmem %s2, 5
    %333 = vst [vmem:[%s332] sm:$0x1] %v330
    %s334 = scalar_lea.vmem [#allocation0], 21
    %v335 = vld [vmem:[%s334] sm:$0x1]
    %s336 = scalar_lea.vmem [#allocation2], 21
    %v337 = vld [vmem:[%s336] sm:$0x1]
    %338 = xla_tuple %v335, %v337
    %339 = xla_tuple %338
    %v340 = vmul.f32 %v335, %v337
    %341 = xla_tuple %v340
    %s342 = scalar_lea.vmem %s2, 21
    %343 = vst [vmem:[%s342] sm:$0x1] %v340
    %s344 = scalar_lea.vmem [#allocation0], 37
    %v345 = vld [vmem:[%s344] sm:$0x1]
    %s346 = scalar_lea.vmem [#allocation2], 37
    %v347 = vld [vmem:[%s346] sm:$0x1]
    %348 = xla_tuple %v345, %v347
    %349 = xla_tuple %348
    %v350 = vmul.f32 %v345, %v347
    %351 = xla_tuple %v350
    %s352 = scalar_lea.vmem %s2, 37
    %353 = vst [vmem:[%s352] sm:$0x1] %v350
    %s354 = scalar_lea.vmem [#allocation0], 53
    %v355 = vld [vmem:[%s354] sm:$0x1]
    %s356 = scalar_lea.vmem [#allocation2], 53
    %v357 = vld [vmem:[%s356] sm:$0x1]
    %358 = xla_tuple %v355, %v357
    %359 = xla_tuple %358
    %v360 = vmul.f32 %v355, %v357
    %361 = xla_tuple %v360
    %s362 = scalar_lea.vmem %s2, 53
    %363 = vst [vmem:[%s362] sm:$0x1] %v360
    %s364 = scalar_lea.vmem [#allocation0], 69
    %v365 = vld [vmem:[%s364] sm:$0x1]
    %s366 = scalar_lea.vmem [#allocation2], 69
    %v367 = vld [vmem:[%s366] sm:$0x1]
    %368 = xla_tuple %v365, %v367
    %369 = xla_tuple %368
    %v370 = vmul.f32 %v365, %v367
    %371 = xla_tuple %v370
    %s372 = scalar_lea.vmem %s2, 69
    %373 = vst [vmem:[%s372] sm:$0x1] %v370
    %s374 = scalar_lea.vmem [#allocation0], 85
    %v375 = vld [vmem:[%s374] sm:$0x1]
    %s376 = scalar_lea.vmem [#allocation2], 85
    %v377 = vld [vmem:[%s376] sm:$0x1]
    %378 = xla_tuple %v375, %v377
    %379 = xla_tuple %378
    %v380 = vmul.f32 %v375, %v377
    %381 = xla_tuple %v380
    %s382 = scalar_lea.vmem %s2, 85
    %383 = vst [vmem:[%s382] sm:$0x1] %v380
    %s384 = scalar_lea.vmem [#allocation0], 6
    %v385 = vld [vmem:[%s384] sm:$0x1]
    %s386 = scalar_lea.vmem [#allocation2], 6
    %v387 = vld [vmem:[%s386] sm:$0x1]
    %388 = xla_tuple %v385, %v387
    %389 = xla_tuple %388
    %v390 = vmul.f32 %v385, %v387
    %391 = xla_tuple %v390
    %s392 = scalar_lea.vmem %s2, 6
    %393 = vst [vmem:[%s392] sm:$0x1] %v390
    %s394 = scalar_lea.vmem [#allocation0], 22
    %v395 = vld [vmem:[%s394] sm:$0x1]
    %s396 = scalar_lea.vmem [#allocation2], 22
    %v397 = vld [vmem:[%s396] sm:$0x1]
    %398 = xla_tuple %v395, %v397
    %399 = xla_tuple %398
    %v400 = vmul.f32 %v395, %v397
    %401 = xla_tuple %v400
    %s402 = scalar_lea.vmem %s2, 22
    %403 = vst [vmem:[%s402] sm:$0x1] %v400
    %s404 = scalar_lea.vmem [#allocation0], 38
    %v405 = vld [vmem:[%s404] sm:$0x1]
    %s406 = scalar_lea.vmem [#allocation2], 38
    %v407 = vld [vmem:[%s406] sm:$0x1]
    %408 = xla_tuple %v405, %v407
    %409 = xla_tuple %408
    %v410 = vmul.f32 %v405, %v407
    %411 = xla_tuple %v410
    %s412 = scalar_lea.vmem %s2, 38
    %413 = vst [vmem:[%s412] sm:$0x1] %v410
    %s414 = scalar_lea.vmem [#allocation0], 54
    %v415 = vld [vmem:[%s414] sm:$0x1]
    %s416 = scalar_lea.vmem [#allocation2], 54
    %v417 = vld [vmem:[%s416] sm:$0x1]
    %418 = xla_tuple %v415, %v417
    %419 = xla_tuple %418
    %v420 = vmul.f32 %v415, %v417
    %421 = xla_tuple %v420
    %s422 = scalar_lea.vmem %s2, 54
    %423 = vst [vmem:[%s422] sm:$0x1] %v420
    %s424 = scalar_lea.vmem [#allocation0], 70
    %v425 = vld [vmem:[%s424] sm:$0x1]
    %s426 = scalar_lea.vmem [#allocation2], 70
    %v427 = vld [vmem:[%s426] sm:$0x1]
    %428 = xla_tuple %v425, %v427
    %429 = xla_tuple %428
    %v430 = vmul.f32 %v425, %v427
    %431 = xla_tuple %v430
    %s432 = scalar_lea.vmem %s2, 70
    %433 = vst [vmem:[%s432] sm:$0x1] %v430
    %s434 = scalar_lea.vmem [#allocation0], 86
    %v435 = vld [vmem:[%s434] sm:$0x1]
    %s436 = scalar_lea.vmem [#allocation2], 86
    %v437 = vld [vmem:[%s436] sm:$0x1]
    %438 = xla_tuple %v435, %v437
    %439 = xla_tuple %438
    %v440 = vmul.f32 %v435, %v437
    %441 = xla_tuple %v440
    %s442 = scalar_lea.vmem %s2, 86
    %443 = vst [vmem:[%s442] sm:$0x1] %v440
    %s444 = scalar_lea.vmem [#allocation0], 7
    %v445 = vld [vmem:[%s444] sm:$0x1]
    %s446 = scalar_lea.vmem [#allocation2], 7
    %v447 = vld [vmem:[%s446] sm:$0x1]
    %448 = xla_tuple %v445, %v447
    %449 = xla_tuple %448
    %v450 = vmul.f32 %v445, %v447
    %451 = xla_tuple %v450
    %s452 = scalar_lea.vmem %s2, 7
    %453 = vst [vmem:[%s452] sm:$0x1] %v450
    %s454 = scalar_lea.vmem [#allocation0], 23
    %v455 = vld [vmem:[%s454] sm:$0x1]
    %s456 = scalar_lea.vmem [#allocation2], 23
    %v457 = vld [vmem:[%s456] sm:$0x1]
    %458 = xla_tuple %v455, %v457
    %459 = xla_tuple %458
    %v460 = vmul.f32 %v455, %v457
    %461 = xla_tuple %v460
    %s462 = scalar_lea.vmem %s2, 23
    %463 = vst [vmem:[%s462] sm:$0x1] %v460
    %s464 = scalar_lea.vmem [#allocation0], 39
    %v465 = vld [vmem:[%s464] sm:$0x1]
    %s466 = scalar_lea.vmem [#allocation2], 39
    %v467 = vld [vmem:[%s466] sm:$0x1]
    %468 = xla_tuple %v465, %v467
    %469 = xla_tuple %468
    %v470 = vmul.f32 %v465, %v467
    %471 = xla_tuple %v470
    %s472 = scalar_lea.vmem %s2, 39
    %473 = vst [vmem:[%s472] sm:$0x1] %v470
    %s474 = scalar_lea.vmem [#allocation0], 55
    %v475 = vld [vmem:[%s474] sm:$0x1]
    %s476 = scalar_lea.vmem [#allocation2], 55
    %v477 = vld [vmem:[%s476] sm:$0x1]
    %478 = xla_tuple %v475, %v477
    %479 = xla_tuple %478
    %v480 = vmul.f32 %v475, %v477
    %481 = xla_tuple %v480
    %s482 = scalar_lea.vmem %s2, 55
    %483 = vst [vmem:[%s482] sm:$0x1] %v480
    %s484 = scalar_lea.vmem [#allocation0], 71
    %v485 = vld [vmem:[%s484] sm:$0x1]
    %s486 = scalar_lea.vmem [#allocation2], 71
    %v487 = vld [vmem:[%s486] sm:$0x1]
    %488 = xla_tuple %v485, %v487
    %489 = xla_tuple %488
    %v490 = vmul.f32 %v485, %v487
    %491 = xla_tuple %v490
    %s492 = scalar_lea.vmem %s2, 71
    %493 = vst [vmem:[%s492] sm:$0x1] %v490
    %s494 = scalar_lea.vmem [#allocation0], 87
    %v495 = vld [vmem:[%s494] sm:$0x1]
    %s496 = scalar_lea.vmem [#allocation2], 87
    %v497 = vld [vmem:[%s496] sm:$0x1]
    %498 = xla_tuple %v495, %v497
    %499 = xla_tuple %498
    %v500 = vmul.f32 %v495, %v497
    %501 = xla_tuple %v500
    %s502 = scalar_lea.vmem %s2, 87
    %503 = vst [vmem:[%s502] sm:$0x1] %v500
    %s504 = scalar_lea.vmem [#allocation0], 8
    %v505 = vld [vmem:[%s504] sm:$0x1]
    %s506 = scalar_lea.vmem [#allocation2], 8
    %v507 = vld [vmem:[%s506] sm:$0x1]
    %508 = xla_tuple %v505, %v507
    %509 = xla_tuple %508
    %v510 = vmul.f32 %v505, %v507
    %511 = xla_tuple %v510
    %s512 = scalar_lea.vmem %s2, 8
    %513 = vst [vmem:[%s512] sm:$0x1] %v510
    %s514 = scalar_lea.vmem [#allocation0], 24
    %v515 = vld [vmem:[%s514] sm:$0x1]
    %s516 = scalar_lea.vmem [#allocation2], 24
    %v517 = vld [vmem:[%s516] sm:$0x1]
    %518 = xla_tuple %v515, %v517
    %519 = xla_tuple %518
    %v520 = vmul.f32 %v515, %v517
    %521 = xla_tuple %v520
    %s522 = scalar_lea.vmem %s2, 24
    %523 = vst [vmem:[%s522] sm:$0x1] %v520
    %s524 = scalar_lea.vmem [#allocation0], 40
    %v525 = vld [vmem:[%s524] sm:$0x1]
    %s526 = scalar_lea.vmem [#allocation2], 40
    %v527 = vld [vmem:[%s526] sm:$0x1]
    %528 = xla_tuple %v525, %v527
    %529 = xla_tuple %528
    %v530 = vmul.f32 %v525, %v527
    %531 = xla_tuple %v530
    %s532 = scalar_lea.vmem %s2, 40
    %533 = vst [vmem:[%s532] sm:$0x1] %v530
    %s534 = scalar_lea.vmem [#allocation0], 56
    %v535 = vld [vmem:[%s534] sm:$0x1]
    %s536 = scalar_lea.vmem [#allocation2], 56
    %v537 = vld [vmem:[%s536] sm:$0x1]
    %538 = xla_tuple %v535, %v537
    %539 = xla_tuple %538
    %v540 = vmul.f32 %v535, %v537
    %541 = xla_tuple %v540
    %s542 = scalar_lea.vmem %s2, 56
    %543 = vst [vmem:[%s542] sm:$0x1] %v540
    %s544 = scalar_lea.vmem [#allocation0], 72
    %v545 = vld [vmem:[%s544] sm:$0x1]
    %s546 = scalar_lea.vmem [#allocation2], 72
    %v547 = vld [vmem:[%s546] sm:$0x1]
    %548 = xla_tuple %v545, %v547
    %549 = xla_tuple %548
    %v550 = vmul.f32 %v545, %v547
    %551 = xla_tuple %v550
    %s552 = scalar_lea.vmem %s2, 72
    %553 = vst [vmem:[%s552] sm:$0x1] %v550
    %s554 = scalar_lea.vmem [#allocation0], 88
    %v555 = vld [vmem:[%s554] sm:$0x1]
    %s556 = scalar_lea.vmem [#allocation2], 88
    %v557 = vld [vmem:[%s556] sm:$0x1]
    %558 = xla_tuple %v555, %v557
    %559 = xla_tuple %558
    %v560 = vmul.f32 %v555, %v557
    %561 = xla_tuple %v560
    %s562 = scalar_lea.vmem %s2, 88
    %563 = vst [vmem:[%s562] sm:$0x1] %v560
    %s564 = scalar_lea.vmem [#allocation0], 9
    %v565 = vld [vmem:[%s564] sm:$0x1]
    %s566 = scalar_lea.vmem [#allocation2], 9
    %v567 = vld [vmem:[%s566] sm:$0x1]
    %568 = xla_tuple %v565, %v567
    %569 = xla_tuple %568
    %v570 = vmul.f32 %v565, %v567
    %571 = xla_tuple %v570
    %s572 = scalar_lea.vmem %s2, 9
    %573 = vst [vmem:[%s572] sm:$0x1] %v570
    %s574 = scalar_lea.vmem [#allocation0], 25
    %v575 = vld [vmem:[%s574] sm:$0x1]
    %s576 = scalar_lea.vmem [#allocation2], 25
    %v577 = vld [vmem:[%s576] sm:$0x1]
    %578 = xla_tuple %v575, %v577
    %579 = xla_tuple %578
    %v580 = vmul.f32 %v575, %v577
    %581 = xla_tuple %v580
    %s582 = scalar_lea.vmem %s2, 25
    %583 = vst [vmem:[%s582] sm:$0x1] %v580
    %s584 = scalar_lea.vmem [#allocation0], 41
    %v585 = vld [vmem:[%s584] sm:$0x1]
    %s586 = scalar_lea.vmem [#allocation2], 41
    %v587 = vld [vmem:[%s586] sm:$0x1]
    %588 = xla_tuple %v585, %v587
    %589 = xla_tuple %588
    %v590 = vmul.f32 %v585, %v587
    %591 = xla_tuple %v590
    %s592 = scalar_lea.vmem %s2, 41
    %593 = vst [vmem:[%s592] sm:$0x1] %v590
    %s594 = scalar_lea.vmem [#allocation0], 57
    %v595 = vld [vmem:[%s594] sm:$0x1]
    %s596 = scalar_lea.vmem [#allocation2], 57
    %v597 = vld [vmem:[%s596] sm:$0x1]
    %598 = xla_tuple %v595, %v597
    %599 = xla_tuple %598
    %v600 = vmul.f32 %v595, %v597
    %601 = xla_tuple %v600
    %s602 = scalar_lea.vmem %s2, 57
    %603 = vst [vmem:[%s602] sm:$0x1] %v600
    %s604 = scalar_lea.vmem [#allocation0], 73
    %v605 = vld [vmem:[%s604] sm:$0x1]
    %s606 = scalar_lea.vmem [#allocation2], 73
    %v607 = vld [vmem:[%s606] sm:$0x1]
    %608 = xla_tuple %v605, %v607
    %609 = xla_tuple %608
    %v610 = vmul.f32 %v605, %v607
    %611 = xla_tuple %v610
    %s612 = scalar_lea.vmem %s2, 73
    %613 = vst [vmem:[%s612] sm:$0x1] %v610
    %s614 = scalar_lea.vmem [#allocation0], 89
    %v615 = vld [vmem:[%s614] sm:$0x1]
    %s616 = scalar_lea.vmem [#allocation2], 89
    %v617 = vld [vmem:[%s616] sm:$0x1]
    %618 = xla_tuple %v615, %v617
    %619 = xla_tuple %618
    %v620 = vmul.f32 %v615, %v617
    %621 = xla_tuple %v620
    %s622 = scalar_lea.vmem %s2, 89
    %623 = vst [vmem:[%s622] sm:$0x1] %v620
    %s624 = scalar_lea.vmem [#allocation0], 10
    %v625 = vld [vmem:[%s624] sm:$0x1]
    %s626 = scalar_lea.vmem [#allocation2], 10
    %v627 = vld [vmem:[%s626] sm:$0x1]
    %628 = xla_tuple %v625, %v627
    %629 = xla_tuple %628
    %v630 = vmul.f32 %v625, %v627
    %631 = xla_tuple %v630
    %s632 = scalar_lea.vmem %s2, 10
    %633 = vst [vmem:[%s632] sm:$0x1] %v630
    %s634 = scalar_lea.vmem [#allocation0], 26
    %v635 = vld [vmem:[%s634] sm:$0x1]
    %s636 = scalar_lea.vmem [#allocation2], 26
    %v637 = vld [vmem:[%s636] sm:$0x1]
    %638 = xla_tuple %v635, %v637
    %639 = xla_tuple %638
    %v640 = vmul.f32 %v635, %v637
    %641 = xla_tuple %v640
    %s642 = scalar_lea.vmem %s2, 26
    %643 = vst [vmem:[%s642] sm:$0x1] %v640
    %s644 = scalar_lea.vmem [#allocation0], 42
    %v645 = vld [vmem:[%s644] sm:$0x1]
    %s646 = scalar_lea.vmem [#allocation2], 42
    %v647 = vld [vmem:[%s646] sm:$0x1]
    %648 = xla_tuple %v645, %v647
    %649 = xla_tuple %648
    %v650 = vmul.f32 %v645, %v647
    %651 = xla_tuple %v650
    %s652 = scalar_lea.vmem %s2, 42
    %653 = vst [vmem:[%s652] sm:$0x1] %v650
    %s654 = scalar_lea.vmem [#allocation0], 58
    %v655 = vld [vmem:[%s654] sm:$0x1]
    %s656 = scalar_lea.vmem [#allocation2], 58
    %v657 = vld [vmem:[%s656] sm:$0x1]
    %658 = xla_tuple %v655, %v657
    %659 = xla_tuple %658
    %v660 = vmul.f32 %v655, %v657
    %661 = xla_tuple %v660
    %s662 = scalar_lea.vmem %s2, 58
    %663 = vst [vmem:[%s662] sm:$0x1] %v660
    %s664 = scalar_lea.vmem [#allocation0], 74
    %v665 = vld [vmem:[%s664] sm:$0x1]
    %s666 = scalar_lea.vmem [#allocation2], 74
    %v667 = vld [vmem:[%s666] sm:$0x1]
    %668 = xla_tuple %v665, %v667
    %669 = xla_tuple %668
    %v670 = vmul.f32 %v665, %v667
    %671 = xla_tuple %v670
    %s672 = scalar_lea.vmem %s2, 74
    %673 = vst [vmem:[%s672] sm:$0x1] %v670
    %s674 = scalar_lea.vmem [#allocation0], 90
    %v675 = vld [vmem:[%s674] sm:$0x1]
    %s676 = scalar_lea.vmem [#allocation2], 90
    %v677 = vld [vmem:[%s676] sm:$0x1]
    %678 = xla_tuple %v675, %v677
    %679 = xla_tuple %678
    %v680 = vmul.f32 %v675, %v677
    %681 = xla_tuple %v680
    %s682 = scalar_lea.vmem %s2, 90
    %683 = vst [vmem:[%s682] sm:$0x1] %v680
    %s684 = scalar_lea.vmem [#allocation0], 11
    %v685 = vld [vmem:[%s684] sm:$0x1]
    %s686 = scalar_lea.vmem [#allocation2], 11
    %v687 = vld [vmem:[%s686] sm:$0x1]
    %688 = xla_tuple %v685, %v687
    %689 = xla_tuple %688
    %v690 = vmul.f32 %v685, %v687
    %691 = xla_tuple %v690
    %s692 = scalar_lea.vmem %s2, 11
    %693 = vst [vmem:[%s692] sm:$0x1] %v690
    %s694 = scalar_lea.vmem [#allocation0], 27
    %v695 = vld [vmem:[%s694] sm:$0x1]
    %s696 = scalar_lea.vmem [#allocation2], 27
    %v697 = vld [vmem:[%s696] sm:$0x1]
    %698 = xla_tuple %v695, %v697
    %699 = xla_tuple %698
    %v700 = vmul.f32 %v695, %v697
    %701 = xla_tuple %v700
    %s702 = scalar_lea.vmem %s2, 27
    %703 = vst [vmem:[%s702] sm:$0x1] %v700
    %s704 = scalar_lea.vmem [#allocation0], 43
    %v705 = vld [vmem:[%s704] sm:$0x1]
    %s706 = scalar_lea.vmem [#allocation2], 43
    %v707 = vld [vmem:[%s706] sm:$0x1]
    %708 = xla_tuple %v705, %v707
    %709 = xla_tuple %708
    %v710 = vmul.f32 %v705, %v707
    %711 = xla_tuple %v710
    %s712 = scalar_lea.vmem %s2, 43
    %713 = vst [vmem:[%s712] sm:$0x1] %v710
    %s714 = scalar_lea.vmem [#allocation0], 59
    %v715 = vld [vmem:[%s714] sm:$0x1]
    %s716 = scalar_lea.vmem [#allocation2], 59
    %v717 = vld [vmem:[%s716] sm:$0x1]
    %718 = xla_tuple %v715, %v717
    %719 = xla_tuple %718
    %v720 = vmul.f32 %v715, %v717
    %721 = xla_tuple %v720
    %s722 = scalar_lea.vmem %s2, 59
    %723 = vst [vmem:[%s722] sm:$0x1] %v720
    %s724 = scalar_lea.vmem [#allocation0], 75
    %v725 = vld [vmem:[%s724] sm:$0x1]
    %s726 = scalar_lea.vmem [#allocation2], 75
    %v727 = vld [vmem:[%s726] sm:$0x1]
    %728 = xla_tuple %v725, %v727
    %729 = xla_tuple %728
    %v730 = vmul.f32 %v725, %v727
    %731 = xla_tuple %v730
    %s732 = scalar_lea.vmem %s2, 75
    %733 = vst [vmem:[%s732] sm:$0x1] %v730
    %s734 = scalar_lea.vmem [#allocation0], 91
    %v735 = vld [vmem:[%s734] sm:$0x1]
    %s736 = scalar_lea.vmem [#allocation2], 91
    %v737 = vld [vmem:[%s736] sm:$0x1]
    %738 = xla_tuple %v735, %v737
    %739 = xla_tuple %738
    %v740 = vmul.f32 %v735, %v737
    %741 = xla_tuple %v740
    %s742 = scalar_lea.vmem %s2, 91
    %743 = vst [vmem:[%s742] sm:$0x1] %v740
    %s744 = scalar_lea.vmem [#allocation0], 12
    %v745 = vld [vmem:[%s744] sm:$0x1]
    %s746 = scalar_lea.vmem [#allocation2], 12
    %v747 = vld [vmem:[%s746] sm:$0x1]
    %748 = xla_tuple %v745, %v747
    %749 = xla_tuple %748
    %v750 = vmul.f32 %v745, %v747
    %751 = xla_tuple %v750
    %s752 = scalar_lea.vmem %s2, 12
    %753 = vst [vmem:[%s752] sm:$0x1] %v750
    %s754 = scalar_lea.vmem [#allocation0], 28
    %v755 = vld [vmem:[%s754] sm:$0x1]
    %s756 = scalar_lea.vmem [#allocation2], 28
    %v757 = vld [vmem:[%s756] sm:$0x1]
    %758 = xla_tuple %v755, %v757
    %759 = xla_tuple %758
    %v760 = vmul.f32 %v755, %v757
    %761 = xla_tuple %v760
    %s762 = scalar_lea.vmem %s2, 28
    %763 = vst [vmem:[%s762] sm:$0x1] %v760
    %s764 = scalar_lea.vmem [#allocation0], 44
    %v765 = vld [vmem:[%s764] sm:$0x1]
    %s766 = scalar_lea.vmem [#allocation2], 44
    %v767 = vld [vmem:[%s766] sm:$0x1]
    %768 = xla_tuple %v765, %v767
    %769 = xla_tuple %768
    %v770 = vmul.f32 %v765, %v767
    %771 = xla_tuple %v770
    %s772 = scalar_lea.vmem %s2, 44
    %773 = vst [vmem:[%s772] sm:$0x1] %v770
    %s774 = scalar_lea.vmem [#allocation0], 60
    %v775 = vld [vmem:[%s774] sm:$0x1]
    %s776 = scalar_lea.vmem [#allocation2], 60
    %v777 = vld [vmem:[%s776] sm:$0x1]
    %778 = xla_tuple %v775, %v777
    %779 = xla_tuple %778
    %v780 = vmul.f32 %v775, %v777
    %781 = xla_tuple %v780
    %s782 = scalar_lea.vmem %s2, 60
    %783 = vst [vmem:[%s782] sm:$0x1] %v780
    %s784 = scalar_lea.vmem [#allocation0], 76
    %v785 = vld [vmem:[%s784] sm:$0x1]
    %s786 = scalar_lea.vmem [#allocation2], 76
    %v787 = vld [vmem:[%s786] sm:$0x1]
    %788 = xla_tuple %v785, %v787
    %789 = xla_tuple %788
    %v790 = vmul.f32 %v785, %v787
    %791 = xla_tuple %v790
    %s792 = scalar_lea.vmem %s2, 76
    %793 = vst [vmem:[%s792] sm:$0x1] %v790
    %s794 = scalar_lea.vmem [#allocation0], 92
    %v795 = vld [vmem:[%s794] sm:$0x1]
    %s796 = scalar_lea.vmem [#allocation2], 92
    %v797 = vld [vmem:[%s796] sm:$0x1]
    %798 = xla_tuple %v795, %v797
    %799 = xla_tuple %798
    %v800 = vmul.f32 %v795, %v797
    %801 = xla_tuple %v800
    %s802 = scalar_lea.vmem %s2, 92
    %803 = vst [vmem:[%s802] sm:$0x1] %v800
    %s804 = scalar_lea.vmem [#allocation0], 13
    %v805 = vld [vmem:[%s804] sm:$0x1]
    %s806 = scalar_lea.vmem [#allocation2], 13
    %v807 = vld [vmem:[%s806] sm:$0x1]
    %808 = xla_tuple %v805, %v807
    %809 = xla_tuple %808
    %v810 = vmul.f32 %v805, %v807
    %811 = xla_tuple %v810
    %s812 = scalar_lea.vmem %s2, 13
    %813 = vst [vmem:[%s812] sm:$0x1] %v810
    %s814 = scalar_lea.vmem [#allocation0], 29
    %v815 = vld [vmem:[%s814] sm:$0x1]
    %s816 = scalar_lea.vmem [#allocation2], 29
    %v817 = vld [vmem:[%s816] sm:$0x1]
    %818 = xla_tuple %v815, %v817
    %819 = xla_tuple %818
    %v820 = vmul.f32 %v815, %v817
    %821 = xla_tuple %v820
    %s822 = scalar_lea.vmem %s2, 29
    %823 = vst [vmem:[%s822] sm:$0x1] %v820
    %s824 = scalar_lea.vmem [#allocation0], 45
    %v825 = vld [vmem:[%s824] sm:$0x1]
    %s826 = scalar_lea.vmem [#allocation2], 45
    %v827 = vld [vmem:[%s826] sm:$0x1]
    %828 = xla_tuple %v825, %v827
    %829 = xla_tuple %828
    %v830 = vmul.f32 %v825, %v827
    %831 = xla_tuple %v830
    %s832 = scalar_lea.vmem %s2, 45
    %833 = vst [vmem:[%s832] sm:$0x1] %v830
    %s834 = scalar_lea.vmem [#allocation0], 61
    %v835 = vld [vmem:[%s834] sm:$0x1]
    %s836 = scalar_lea.vmem [#allocation2], 61
    %v837 = vld [vmem:[%s836] sm:$0x1]
    %838 = xla_tuple %v835, %v837
    %839 = xla_tuple %838
    %v840 = vmul.f32 %v835, %v837
    %841 = xla_tuple %v840
    %s842 = scalar_lea.vmem %s2, 61
    %843 = vst [vmem:[%s842] sm:$0x1] %v840
    %s844 = scalar_lea.vmem [#allocation0], 77
    %v845 = vld [vmem:[%s844] sm:$0x1]
    %s846 = scalar_lea.vmem [#allocation2], 77
    %v847 = vld [vmem:[%s846] sm:$0x1]
    %848 = xla_tuple %v845, %v847
    %849 = xla_tuple %848
    %v850 = vmul.f32 %v845, %v847
    %851 = xla_tuple %v850
    %s852 = scalar_lea.vmem %s2, 77
    %853 = vst [vmem:[%s852] sm:$0x1] %v850
    %s854 = scalar_lea.vmem [#allocation0], 93
    %v855 = vld [vmem:[%s854] sm:$0x1]
    %s856 = scalar_lea.vmem [#allocation2], 93
    %v857 = vld [vmem:[%s856] sm:$0x1]
    %858 = xla_tuple %v855, %v857
    %859 = xla_tuple %858
    %v860 = vmul.f32 %v855, %v857
    %861 = xla_tuple %v860
    %s862 = scalar_lea.vmem %s2, 93
    %863 = vst [vmem:[%s862] sm:$0x1] %v860
    %s864 = scalar_lea.vmem [#allocation0], 14
    %v865 = vld [vmem:[%s864] sm:$0x1]
    %s866 = scalar_lea.vmem [#allocation2], 14
    %v867 = vld [vmem:[%s866] sm:$0x1]
    %868 = xla_tuple %v865, %v867
    %869 = xla_tuple %868
    %v870 = vmul.f32 %v865, %v867
    %871 = xla_tuple %v870
    %s872 = scalar_lea.vmem %s2, 14
    %873 = vst [vmem:[%s872] sm:$0x1] %v870
    %s874 = scalar_lea.vmem [#allocation0], 30
    %v875 = vld [vmem:[%s874] sm:$0x1]
    %s876 = scalar_lea.vmem [#allocation2], 30
    %v877 = vld [vmem:[%s876] sm:$0x1]
    %878 = xla_tuple %v875, %v877
    %879 = xla_tuple %878
    %v880 = vmul.f32 %v875, %v877
    %881 = xla_tuple %v880
    %s882 = scalar_lea.vmem %s2, 30
    %883 = vst [vmem:[%s882] sm:$0x1] %v880
    %s884 = scalar_lea.vmem [#allocation0], 46
    %v885 = vld [vmem:[%s884] sm:$0x1]
    %s886 = scalar_lea.vmem [#allocation2], 46
    %v887 = vld [vmem:[%s886] sm:$0x1]
    %888 = xla_tuple %v885, %v887
    %889 = xla_tuple %888
    %v890 = vmul.f32 %v885, %v887
    %891 = xla_tuple %v890
    %s892 = scalar_lea.vmem %s2, 46
    %893 = vst [vmem:[%s892] sm:$0x1] %v890
    %s894 = scalar_lea.vmem [#allocation0], 62
    %v895 = vld [vmem:[%s894] sm:$0x1]
    %s896 = scalar_lea.vmem [#allocation2], 62
    %v897 = vld [vmem:[%s896] sm:$0x1]
    %898 = xla_tuple %v895, %v897
    %899 = xla_tuple %898
    %v900 = vmul.f32 %v895, %v897
    %901 = xla_tuple %v900
    %s902 = scalar_lea.vmem %s2, 62
    %903 = vst [vmem:[%s902] sm:$0x1] %v900
    %s904 = scalar_lea.vmem [#allocation0], 78
    %v905 = vld [vmem:[%s904] sm:$0x1]
    %s906 = scalar_lea.vmem [#allocation2], 78
    %v907 = vld [vmem:[%s906] sm:$0x1]
    %908 = xla_tuple %v905, %v907
    %909 = xla_tuple %908
    %v910 = vmul.f32 %v905, %v907
    %911 = xla_tuple %v910
    %s912 = scalar_lea.vmem %s2, 78
    %913 = vst [vmem:[%s912] sm:$0x1] %v910
    %s914 = scalar_lea.vmem [#allocation0], 94
    %v915 = vld [vmem:[%s914] sm:$0x1]
    %s916 = scalar_lea.vmem [#allocation2], 94
    %v917 = vld [vmem:[%s916] sm:$0x1]
    %918 = xla_tuple %v915, %v917
    %919 = xla_tuple %918
    %v920 = vmul.f32 %v915, %v917
    %921 = xla_tuple %v920
    %s922 = scalar_lea.vmem %s2, 94
    %923 = vst [vmem:[%s922] sm:$0x1] %v920
    %s924 = scalar_lea.vmem [#allocation0], 15
    %v925 = vld [vmem:[%s924] sm:$0x1]
    %s926 = scalar_lea.vmem [#allocation2], 15
    %v927 = vld [vmem:[%s926] sm:$0x1]
    %928 = xla_tuple %v925, %v927
    %929 = xla_tuple %928
    %v930 = vmul.f32 %v925, %v927
    %931 = xla_tuple %v930
    %s932 = scalar_lea.vmem %s2, 15
    %933 = vst [vmem:[%s932] sm:$0x1] %v930
    %s934 = scalar_lea.vmem [#allocation0], 31
    %v935 = vld [vmem:[%s934] sm:$0x1]
    %s936 = scalar_lea.vmem [#allocation2], 31
    %v937 = vld [vmem:[%s936] sm:$0x1]
    %938 = xla_tuple %v935, %v937
    %939 = xla_tuple %938
    %v940 = vmul.f32 %v935, %v937
    %941 = xla_tuple %v940
    %s942 = scalar_lea.vmem %s2, 31
    %943 = vst [vmem:[%s942] sm:$0x1] %v940
    %s944 = scalar_lea.vmem [#allocation0], 47
    %v945 = vld [vmem:[%s944] sm:$0x1]
    %s946 = scalar_lea.vmem [#allocation2], 47
    %v947 = vld [vmem:[%s946] sm:$0x1]
    %948 = xla_tuple %v945, %v947
    %949 = xla_tuple %948
    %v950 = vmul.f32 %v945, %v947
    %951 = xla_tuple %v950
    %s952 = scalar_lea.vmem %s2, 47
    %953 = vst [vmem:[%s952] sm:$0x1] %v950
    %s954 = scalar_lea.vmem [#allocation0], 63
    %v955 = vld [vmem:[%s954] sm:$0x1]
    %s956 = scalar_lea.vmem [#allocation2], 63
    %v957 = vld [vmem:[%s956] sm:$0x1]
    %958 = xla_tuple %v955, %v957
    %959 = xla_tuple %958
    %v960 = vmul.f32 %v955, %v957
    %961 = xla_tuple %v960
    %s962 = scalar_lea.vmem %s2, 63
    %963 = vst [vmem:[%s962] sm:$0x1] %v960
    %s964 = scalar_lea.vmem [#allocation0], 79
    %v965 = vld [vmem:[%s964] sm:$0x1]
    %s966 = scalar_lea.vmem [#allocation2], 79
    %v967 = vld [vmem:[%s966] sm:$0x1]
    %968 = xla_tuple %v965, %v967
    %969 = xla_tuple %968
    %v970 = vmul.f32 %v965, %v967
    %971 = xla_tuple %v970
    %s972 = scalar_lea.vmem %s2, 79
    %973 = vst [vmem:[%s972] sm:$0x1] %v970
    %s974 = scalar_lea.vmem [#allocation0], 95
    %v975 = vld [vmem:[%s974] sm:$0x1]
    %s976 = scalar_lea.vmem [#allocation2], 95
    %v977 = vld [vmem:[%s976] sm:$0x1]
    %978 = xla_tuple %v975, %v977
    %979 = xla_tuple %978
    %v980 = vmul.f32 %v975, %v977
    %981 = xla_tuple %v980
    %s982 = scalar_lea.vmem %s2, 95
    %983 = vst [vmem:[%s982] sm:$0x1] %v980
    %984 = vsyncpa [#allocation1], 1
    %985 = vsyncpa [#allocation3], 1

// kernel: render_loss_stage0.4
$region0: #{render_loss_stage0.4}
  #allocation0 [shape = 'u32[]', space=smem, size = 0x4, offset = 0x4, fixed_abs, tag = 'smem constant byte address 0x4 - core index']
  #allocation1 [shape = 'u32[144,128]{1,0:T(1,128)}', space=vmem, size = 0x12000, scoped, tag = 'internal scratch']
  %s0 = inlined_call_operand.vmem [shape: f32[3,1536], index: 0, kind: input, shape index: {}]
  %s1 = inlined_call_operand.vmem [shape: f32[8,1536], index: 1, kind: input, shape index: {}]
  %s2 = inlined_call_operand.vmem [shape: f32[1,8,4], index: 2, kind: output, shape index: {}]
  %s3 = sld [smem:[#allocation0]]
  $region18: #{render_loss_stage0.4} parent=0
    _
  %s5 = ssub.s32 1, %s3
  %s6 = scalar_select 0, %s5, %s3
  // Predicated region
  $region2: #{render_loss_stage0.4} parent=0 // pred_check
    _
  $region3: #{render_loss_stage0.4} parent=0 // pred_check_branch
    %8 = sbr.rel (0) target = $region5
  $region4: #{render_loss_stage0.4} parent=0 // pred_region
    _
  $region5: #{render_loss_stage0.4} parent=0 // pred_fallthru
    _
  // Predicated region
  $region6: #{render_loss_stage0.4} parent=0 // pred_check
    _
  $region7: #{render_loss_stage0.4} parent=0 // pred_check_branch
    %10 = sbr.rel (0) target = $region9
  $region8: #{render_loss_stage0.4} parent=0 // pred_region
    _
  $region9: #{render_loss_stage0.4} parent=0 // pred_fallthru
    _
  %v11 = vld [vmem:[%s1] sm:$0xff]
  %v12 = vld [vmem:[%s1 + $0x8] sm:$0xff]
  %v13 = vld [vmem:[%s1 + $0x10] sm:$0xff]
  %v14 = vld [vmem:[%s1 + $0x18] sm:$0xff]
  %v15 = vld [vmem:[%s1 + $0x20] sm:$0xff]
  %v16 = vld [vmem:[%s1 + $0x28] sm:$0xff]
  %v17 = vld [vmem:[%s1 + $0x30] sm:$0xff]
  %v18 = vld [vmem:[%s1 + $0x38] sm:$0xff]
  %v19 = vld [vmem:[%s1 + $0x40] sm:$0xff]
  %v20 = vld [vmem:[%s1 + $0x48] sm:$0xff]
  %v21 = vld [vmem:[%s1 + $0x50] sm:$0xff]
  %v22 = vld [vmem:[%s1 + $0x58] sm:$0xff]
  %v23 = vld [vmem:[%s0] ss:$4 sm:$0xff]
  %s24 = scalar_lea.vmem %s0, 32
  %v25 = vld [vmem:[%s24] ss:$4 sm:$0xf]
  %v28 = vlaneseq
  %v29 = vshrl.u32 %v28, 7
  %v30 = vsub.s32 0, %v29
  %v31 = vrot.slane %v23, %v30
  %v32 = vlaneseq
  %v33 = vshrl.u32 %v32, 7
  %v34 = vsub.s32 1, %v33
  %v35 = vrot.slane %v23, %v34
  %v36 = vlaneseq
  %v37 = vshrl.u32 %v36, 7
  %v38 = vsub.s32 2, %v37
  %v39 = vrot.slane %v23, %v38
  %v40 = vlaneseq
  %v41 = vshrl.u32 %v40, 7
  %v42 = vsub.s32 3, %v41
  %v43 = vrot.slane %v23, %v42
  %v44 = vlaneseq
  %v45 = vshrl.u32 %v44, 7
  %v46 = vsub.s32 4, %v45
  %v47 = vrot.slane %v23, %v46
  %v48 = vlaneseq
  %v49 = vshrl.u32 %v48, 7
  %v50 = vsub.s32 5, %v49
  %v51 = vrot.slane %v23, %v50
  %v52 = vlaneseq
  %v53 = vshrl.u32 %v52, 7
  %v54 = vsub.s32 6, %v53
  %v55 = vrot.slane %v23, %v54
  %v56 = vlaneseq
  %v57 = vshrl.u32 %v56, 7
  %v58 = vsub.s32 7, %v57
  %v59 = vrot.slane %v23, %v58
  %v60 = vlaneseq
  %v61 = vshrl.u32 %v60, 7
  %v62 = vsub.s32 0, %v61
  %v63 = vrot.slane %v25, %v62
  %v64 = vlaneseq
  %v65 = vshrl.u32 %v64, 7
  %v66 = vsub.s32 1, %v65
  %v67 = vrot.slane %v25, %v66
  %v68 = vlaneseq
  %v69 = vshrl.u32 %v68, 7
  %v70 = vsub.s32 2, %v69
  %v71 = vrot.slane %v25, %v70
  %v72 = vlaneseq
  %v73 = vshrl.u32 %v72, 7
  %v74 = vsub.s32 3, %v73
  %v75 = vrot.slane %v25, %v74
  %v88 = vmul.f32 %v11, %v31
  %v89 = vmul.f32 %v12, %v35
  %v90 = vmul.f32 %v13, %v39
  %v91 = vmul.f32 %v14, %v43
  %v92 = vmul.f32 %v15, %v47
  %v93 = vmul.f32 %v16, %v51
  %v94 = vmul.f32 %v17, %v55
  %v95 = vmul.f32 %v18, %v59
  %v96 = vmul.f32 %v19, %v63
  %v97 = vmul.f32 %v20, %v67
  %v98 = vmul.f32 %v21, %v71
  %v99 = vmul.f32 %v22, %v75
  %v100 = vadd.f32 %v88, %v89
  %v101 = vadd.f32 %v100, %v90
  %v102 = vadd.f32 %v101, %v91
  %v103 = vadd.f32 %v102, %v92
  %v104 = vadd.f32 %v103, %v93
  %v105 = vadd.f32 %v104, %v94
  %v106 = vadd.f32 %v105, %v95
  %v107 = vadd.f32 %v106, %v96
  %v108 = vadd.f32 %v107, %v97
  %v109 = vadd.f32 %v108, %v98
  %v110 = vadd.f32 %v109, %v99
  %111 = vadd.xlane.f32.xlu0 %v110
  %v112 = vpop.xlane.xlu0 %111
  %vm113 = vcmask 7168
  %114 = vst.msk [vmem:[%s2] sm:$0xff] %vm113, %v112
  %s115 = scalar_lea.vmem %s0, 1
  %v116 = vld [vmem:[%s115] ss:$4 sm:$0xff]
  %s117 = scalar_lea.vmem %s0, 33
  %v118 = vld [vmem:[%s117] ss:$4 sm:$0xf]
  %v121 = vlaneseq
  %v122 = vshrl.u32 %v121, 7
  %v123 = vsub.s32 0, %v122
  %v124 = vrot.slane %v116, %v123
  %v125 = vlaneseq
  %v126 = vshrl.u32 %v125, 7
  %v127 = vsub.s32 1, %v126
  %v128 = vrot.slane %v116, %v127
  %v129 = vlaneseq
  %v130 = vshrl.u32 %v129, 7
  %v131 = vsub.s32 2, %v130
  %v132 = vrot.slane %v116, %v131
  %v133 = vlaneseq
  %v134 = vshrl.u32 %v133, 7
  %v135 = vsub.s32 3, %v134
  %v136 = vrot.slane %v116, %v135
  %v137 = vlaneseq
  %v138 = vshrl.u32 %v137, 7
  %v139 = vsub.s32 4, %v138
  %v140 = vrot.slane %v116, %v139
  %v141 = vlaneseq
  %v142 = vshrl.u32 %v141, 7
  %v143 = vsub.s32 5, %v142
  %v144 = vrot.slane %v116, %v143
  %v145 = vlaneseq
  %v146 = vshrl.u32 %v145, 7
  %v147 = vsub.s32 6, %v146
  %v148 = vrot.slane %v116, %v147
  %v149 = vlaneseq
  %v150 = vshrl.u32 %v149, 7
  %v151 = vsub.s32 7, %v150
  %v152 = vrot.slane %v116, %v151
  %v153 = vlaneseq
  %v154 = vshrl.u32 %v153, 7
  %v155 = vsub.s32 0, %v154
  %v156 = vrot.slane %v118, %v155
  %v157 = vlaneseq
  %v158 = vshrl.u32 %v157, 7
  %v159 = vsub.s32 1, %v158
  %v160 = vrot.slane %v118, %v159
  %v161 = vlaneseq
  %v162 = vshrl.u32 %v161, 7
  %v163 = vsub.s32 2, %v162
  %v164 = vrot.slane %v118, %v163
  %v165 = vlaneseq
  %v166 = vshrl.u32 %v165, 7
  %v167 = vsub.s32 3, %v166
  %v168 = vrot.slane %v118, %v167
  %v181 = vmul.f32 %v11, %v124
  %v182 = vmul.f32 %v12, %v128
  %v183 = vmul.f32 %v13, %v132
  %v184 = vmul.f32 %v14, %v136
  %v185 = vmul.f32 %v15, %v140
  %v186 = vmul.f32 %v16, %v144
  %v187 = vmul.f32 %v17, %v148
  %v188 = vmul.f32 %v18, %v152
  %v189 = vmul.f32 %v19, %v156
  %v190 = vmul.f32 %v20, %v160
  %v191 = vmul.f32 %v21, %v164
  %v192 = vmul.f32 %v22, %v168
  %v193 = vadd.f32 %v181, %v182
  %v194 = vadd.f32 %v193, %v183
  %v195 = vadd.f32 %v194, %v184
  %v196 = vadd.f32 %v195, %v185
  %v197 = vadd.f32 %v196, %v186
  %v198 = vadd.f32 %v197, %v187
  %v199 = vadd.f32 %v198, %v188
  %v200 = vadd.f32 %v199, %v189
  %v201 = vadd.f32 %v200, %v190
  %v202 = vadd.f32 %v201, %v191
  %v203 = vadd.f32 %v202, %v192
  %204 = vadd.xlane.f32.xlu0 %v203
  %v205 = vpop.xlane.xlu0 %204
  %vm206 = vcmask 15368
  %207 = vst.msk [vmem:[%s2] sm:$0xff] %vm206, %v205
  %s208 = scalar_lea.vmem %s0, 2
  %v209 = vld [vmem:[%s208] ss:$4 sm:$0xff]
  %s210 = scalar_lea.vmem %s0, 34
  %v211 = vld [vmem:[%s210] ss:$4 sm:$0xf]
  %v214 = vlaneseq
  %v215 = vshrl.u32 %v214, 7
  %v216 = vsub.s32 0, %v215
  %v217 = vrot.slane %v209, %v216
  %v218 = vlaneseq
  %v219 = vshrl.u32 %v218, 7
  %v220 = vsub.s32 1, %v219
  %v221 = vrot.slane %v209, %v220
  %v222 = vlaneseq
  %v223 = vshrl.u32 %v222, 7
  %v224 = vsub.s32 2, %v223
  %v225 = vrot.slane %v209, %v224
  %v226 = vlaneseq
  %v227 = vshrl.u32 %v226, 7
  %v228 = vsub.s32 3, %v227
  %v229 = vrot.slane %v209, %v228
  %v230 = vlaneseq
  %v231 = vshrl.u32 %v230, 7
  %v232 = vsub.s32 4, %v231
  %v233 = vrot.slane %v209, %v232
  %v234 = vlaneseq
  %v235 = vshrl.u32 %v234, 7
  %v236 = vsub.s32 5, %v235
  %v237 = vrot.slane %v209, %v236
  %v238 = vlaneseq
  %v239 = vshrl.u32 %v238, 7
  %v240 = vsub.s32 6, %v239
  %v241 = vrot.slane %v209, %v240
  %v242 = vlaneseq
  %v243 = vshrl.u32 %v242, 7
  %v244 = vsub.s32 7, %v243
  %v245 = vrot.slane %v209, %v244
  %v246 = vlaneseq
  %v247 = vshrl.u32 %v246, 7
  %v248 = vsub.s32 0, %v247
  %v249 = vrot.slane %v211, %v248
  %v250 = vlaneseq
  %v251 = vshrl.u32 %v250, 7
  %v252 = vsub.s32 1, %v251
  %v253 = vrot.slane %v211, %v252
  %v254 = vlaneseq
  %v255 = vshrl.u32 %v254, 7
  %v256 = vsub.s32 2, %v255
  %v257 = vrot.slane %v211, %v256
  %v258 = vlaneseq
  %v259 = vshrl.u32 %v258, 7
  %v260 = vsub.s32 3, %v259
  %v261 = vrot.slane %v211, %v260
  %v274 = vmul.f32 %v11, %v217
  %v275 = vmul.f32 %v12, %v221
  %v276 = vmul.f32 %v13, %v225
  %v277 = vmul.f32 %v14, %v229
  %v278 = vmul.f32 %v15, %v233
  %v279 = vmul.f32 %v16, %v237
  %v280 = vmul.f32 %v17, %v241
  %v281 = vmul.f32 %v18, %v245
  %v282 = vmul.f32 %v19, %v249
  %v283 = vmul.f32 %v20, %v253
  %v284 = vmul.f32 %v21, %v257
  %v285 = vmul.f32 %v22, %v261
  %v286 = vadd.f32 %v274, %v275
  %v287 = vadd.f32 %v286, %v276
  %v288 = vadd.f32 %v287, %v277
  %v289 = vadd.f32 %v288, %v278
  %v290 = vadd.f32 %v289, %v279
  %v291 = vadd.f32 %v290, %v280
  %v292 = vadd.f32 %v291, %v281
  %v293 = vadd.f32 %v292, %v282
  %v294 = vadd.f32 %v293, %v283
  %v295 = vadd.f32 %v294, %v284
  %v296 = vadd.f32 %v295, %v285
  %297 = vadd.xlane.f32.xlu0 %v296
  %v298 = vpop.xlane.xlu0 %297
  %vm299 = vcmask 23568
  %300 = vst.msk [vmem:[%s2] sm:$0xff] %vm299, %v298
  %v301 = vadd.f32 %v11, %v12
  %v302 = vadd.f32 %v301, %v13
  %v303 = vadd.f32 %v302, %v14
  %v304 = vadd.f32 %v303, %v15
  %v305 = vadd.f32 %v304, %v16
  %v306 = vadd.f32 %v305, %v17
  %v307 = vadd.f32 %v306, %v18
  %v308 = vadd.f32 %v307, %v19
  %v309 = vadd.f32 %v308, %v20
  %v310 = vadd.f32 %v309, %v21
  %v311 = vadd.f32 %v310, %v22
  %312 = vadd.xlane.f32.xlu0 %v311
  %v313 = vpop.xlane.xlu0 %312
  %vm314 = vcmask 31768
  %315 = vst.msk [vmem:[%s2] sm:$0xff] %vm314, %v313
  // Predicated region
  $region10: #{render_loss_stage0.4} parent=0 // pred_check
    _
  $region11: #{render_loss_stage0.4} parent=0 // pred_check_branch
    %317 = sbr.rel (0) target = $region13
  $region12: #{render_loss_stage0.4} parent=0 // pred_region
    _
  $region13: #{render_loss_stage0.4} parent=0 // pred_fallthru
    _
  // Predicated region
  $region14: #{render_loss_stage0.4} parent=0 // pred_check
    _
  $region15: #{render_loss_stage0.4} parent=0 // pred_check_branch
    %319 = sbr.rel (0) target = $region17
  $region16: #{render_loss_stage0.4} parent=0 // pred_region
    _
  $region17: #{render_loss_stage0.4} parent=0 // pred_fallthru
    _

// kernel: render_loss_stage0.5
$region0: #{render_loss_stage0.5}
  #allocation0 [shape = 'u32[]', space=smem, size = 0x4, offset = 0x4, fixed_abs, tag = 'smem constant byte address 0x4 - core index']
  #allocation1 [shape = 'u32[144,128]{1,0:T(1,128)}', space=vmem, size = 0x12000, scoped, tag = 'internal scratch']
  %s0 = inlined_call_operand.vmem [shape: f32[8,3], index: 0, kind: input, shape index: {}]
  %s1 = inlined_call_operand.vmem [shape: f32[3,1536], index: 1, kind: input, shape index: {}]
  %s2 = inlined_call_operand.vmem [shape: f32[8,1536], index: 2, kind: input, shape index: {}]
  %s3 = inlined_call_operand.vmem [shape: f32[1,8,1], index: 3, kind: output, shape index: {}]
  %s4 = sld [smem:[#allocation0]]
  $region22: #{render_loss_stage0.5} parent=0
    _
  %s6 = ssub.s32 1, %s4
  %s7 = scalar_select 0, %s6, %s4
  // Predicated region
  $region2: #{render_loss_stage0.5} parent=0 // pred_check
    _
  $region3: #{render_loss_stage0.5} parent=0 // pred_check_branch
    %9 = sbr.rel (0) target = $region5
  $region4: #{render_loss_stage0.5} parent=0 // pred_region
    _
  $region5: #{render_loss_stage0.5} parent=0 // pred_fallthru
    _
  // Predicated region
  $region6: #{render_loss_stage0.5} parent=0 // pred_check
    _
  $region7: #{render_loss_stage0.5} parent=0 // pred_check_branch
    %11 = sbr.rel (0) target = $region9
  $region8: #{render_loss_stage0.5} parent=0 // pred_region
    _
  $region9: #{render_loss_stage0.5} parent=0 // pred_fallthru
    _
  // Predicated region
  $region10: #{render_loss_stage0.5} parent=0 // pred_check
    _
  $region11: #{render_loss_stage0.5} parent=0 // pred_check_branch
    %13 = sbr.rel (0) target = $region13
  $region12: #{render_loss_stage0.5} parent=0 // pred_region
    _
  $region13: #{render_loss_stage0.5} parent=0 // pred_fallthru
    _
  %v14 = vld [vmem:[%s2] sm:$0xff]
  %v15 = vld [vmem:[%s2 + $0x8] sm:$0xff]
  %v16 = vld [vmem:[%s2 + $0x10] sm:$0xff]
  %v17 = vld [vmem:[%s2 + $0x18] sm:$0xff]
  %v18 = vld [vmem:[%s2 + $0x20] sm:$0xff]
  %v19 = vld [vmem:[%s2 + $0x28] sm:$0xff]
  %v20 = vld [vmem:[%s2 + $0x30] sm:$0xff]
  %v21 = vld [vmem:[%s2 + $0x38] sm:$0xff]
  %v22 = vld [vmem:[%s2 + $0x40] sm:$0xff]
  %v23 = vld [vmem:[%s2 + $0x48] sm:$0xff]
  %v24 = vld [vmem:[%s2 + $0x50] sm:$0xff]
  %v25 = vld [vmem:[%s2 + $0x58] sm:$0xff]
  %v26 = vld [vmem:[%s0] sm:$0xff]
  %v27 = vld [vmem:[%s1] ss:$4 sm:$0xff]
  %s28 = scalar_lea.vmem %s1, 32
  %v29 = vld [vmem:[%s28] ss:$4 sm:$0xf]
  %v32 = vlaneseq
  %v33 = vshrl.u32 %v32, 7
  %v34 = vsub.s32 0, %v33
  %v35 = vrot.slane %v27, %v34
  %v36 = vlaneseq
  %v37 = vshrl.u32 %v36, 7
  %v38 = vsub.s32 1, %v37
  %v39 = vrot.slane %v27, %v38
  %v40 = vlaneseq
  %v41 = vshrl.u32 %v40, 7
  %v42 = vsub.s32 2, %v41
  %v43 = vrot.slane %v27, %v42
  %v44 = vlaneseq
  %v45 = vshrl.u32 %v44, 7
  %v46 = vsub.s32 3, %v45
  %v47 = vrot.slane %v27, %v46
  %v48 = vlaneseq
  %v49 = vshrl.u32 %v48, 7
  %v50 = vsub.s32 4, %v49
  %v51 = vrot.slane %v27, %v50
  %v52 = vlaneseq
  %v53 = vshrl.u32 %v52, 7
  %v54 = vsub.s32 5, %v53
  %v55 = vrot.slane %v27, %v54
  %v56 = vlaneseq
  %v57 = vshrl.u32 %v56, 7
  %v58 = vsub.s32 6, %v57
  %v59 = vrot.slane %v27, %v58
  %v60 = vlaneseq
  %v61 = vshrl.u32 %v60, 7
  %v62 = vsub.s32 7, %v61
  %v63 = vrot.slane %v27, %v62
  %v64 = vlaneseq
  %v65 = vshrl.u32 %v64, 7
  %v66 = vsub.s32 0, %v65
  %v67 = vrot.slane %v29, %v66
  %v68 = vlaneseq
  %v69 = vshrl.u32 %v68, 7
  %v70 = vsub.s32 1, %v69
  %v71 = vrot.slane %v29, %v70
  %v72 = vlaneseq
  %v73 = vshrl.u32 %v72, 7
  %v74 = vsub.s32 2, %v73
  %v75 = vrot.slane %v29, %v74
  %v76 = vlaneseq
  %v77 = vshrl.u32 %v76, 7
  %v78 = vsub.s32 3, %v77
  %v79 = vrot.slane %v29, %v78
  %v92 = vmul.f32 %v35, %v14
  %v93 = vmul.f32 %v39, %v15
  %v94 = vmul.f32 %v43, %v16
  %v95 = vmul.f32 %v47, %v17
  %v96 = vmul.f32 %v51, %v18
  %v97 = vmul.f32 %v55, %v19
  %v98 = vmul.f32 %v59, %v20
  %v99 = vmul.f32 %v63, %v21
  %v100 = vmul.f32 %v67, %v22
  %v101 = vmul.f32 %v71, %v23
  %v102 = vmul.f32 %v75, %v24
  %v103 = vmul.f32 %v79, %v25
  %105 = vset.pattern.permute.xlu0 0
  %106 = vperm.xlu0 %105, %v26
  %v107 = vpop.permute.xlu0 %106
  %v109 = vmul.f32 %v107, %v14
  %v110 = vmul.f32 %v107, %v15
  %v111 = vmul.f32 %v107, %v16
  %v112 = vmul.f32 %v107, %v17
  %v113 = vmul.f32 %v107, %v18
  %v114 = vmul.f32 %v107, %v19
  %v115 = vmul.f32 %v107, %v20
  %v116 = vmul.f32 %v107, %v21
  %v117 = vmul.f32 %v107, %v22
  %v118 = vmul.f32 %v107, %v23
  %v119 = vmul.f32 %v107, %v24
  %v120 = vmul.f32 %v107, %v25
  %v121 = vsub.f32 %v92, %v109
  %v122 = vsub.f32 %v93, %v110
  %v123 = vsub.f32 %v94, %v111
  %v124 = vsub.f32 %v95, %v112
  %v125 = vsub.f32 %v96, %v113
  %v126 = vsub.f32 %v97, %v114
  %v127 = vsub.f32 %v98, %v115
  %v128 = vsub.f32 %v99, %v116
  %v129 = vsub.f32 %v100, %v117
  %v130 = vsub.f32 %v101, %v118
  %v131 = vsub.f32 %v102, %v119
  %v132 = vsub.f32 %v103, %v120
  %v133 = vand.u32 2147483647, %v121
  %v134 = vand.u32 2147483647, %v122
  %v135 = vand.u32 2147483647, %v123
  %v136 = vand.u32 2147483647, %v124
  %v137 = vand.u32 2147483647, %v125
  %v138 = vand.u32 2147483647, %v126
  %v139 = vand.u32 2147483647, %v127
  %v140 = vand.u32 2147483647, %v128
  %v141 = vand.u32 2147483647, %v129
  %v142 = vand.u32 2147483647, %v130
  %v143 = vand.u32 2147483647, %v131
  %v144 = vand.u32 2147483647, %v132
  %v145 = vadd.f32 %v133, 0.0
  %v146 = vadd.f32 %v134, 0.0
  %v147 = vadd.f32 %v135, 0.0
  %v148 = vadd.f32 %v136, 0.0
  %v149 = vadd.f32 %v137, 0.0
  %v150 = vadd.f32 %v138, 0.0
  %v151 = vadd.f32 %v139, 0.0
  %v152 = vadd.f32 %v140, 0.0
  %v153 = vadd.f32 %v141, 0.0
  %v154 = vadd.f32 %v142, 0.0
  %v155 = vadd.f32 %v143, 0.0
  %v156 = vadd.f32 %v144, 0.0
  %s157 = scalar_lea.vmem %s1, 1
  %v158 = vld [vmem:[%s157] ss:$4 sm:$0xff]
  %s159 = scalar_lea.vmem %s1, 33
  %v160 = vld [vmem:[%s159] ss:$4 sm:$0xf]
  %v163 = vlaneseq
  %v164 = vshrl.u32 %v163, 7
  %v165 = vsub.s32 0, %v164
  %v166 = vrot.slane %v158, %v165
  %v167 = vlaneseq
  %v168 = vshrl.u32 %v167, 7
  %v169 = vsub.s32 1, %v168
  %v170 = vrot.slane %v158, %v169
  %v171 = vlaneseq
  %v172 = vshrl.u32 %v171, 7
  %v173 = vsub.s32 2, %v172
  %v174 = vrot.slane %v158, %v173
  %v175 = vlaneseq
  %v176 = vshrl.u32 %v175, 7
  %v177 = vsub.s32 3, %v176
  %v178 = vrot.slane %v158, %v177
  %v179 = vlaneseq
  %v180 = vshrl.u32 %v179, 7
  %v181 = vsub.s32 4, %v180
  %v182 = vrot.slane %v158, %v181
  %v183 = vlaneseq
  %v184 = vshrl.u32 %v183, 7
  %v185 = vsub.s32 5, %v184
  %v186 = vrot.slane %v158, %v185
  %v187 = vlaneseq
  %v188 = vshrl.u32 %v187, 7
  %v189 = vsub.s32 6, %v188
  %v190 = vrot.slane %v158, %v189
  %v191 = vlaneseq
  %v192 = vshrl.u32 %v191, 7
  %v193 = vsub.s32 7, %v192
  %v194 = vrot.slane %v158, %v193
  %v195 = vlaneseq
  %v196 = vshrl.u32 %v195, 7
  %v197 = vsub.s32 0, %v196
  %v198 = vrot.slane %v160, %v197
  %v199 = vlaneseq
  %v200 = vshrl.u32 %v199, 7
  %v201 = vsub.s32 1, %v200
  %v202 = vrot.slane %v160, %v201
  %v203 = vlaneseq
  %v204 = vshrl.u32 %v203, 7
  %v205 = vsub.s32 2, %v204
  %v206 = vrot.slane %v160, %v205
  %v207 = vlaneseq
  %v208 = vshrl.u32 %v207, 7
  %v209 = vsub.s32 3, %v208
  %v210 = vrot.slane %v160, %v209
  %v223 = vmul.f32 %v166, %v14
  %v224 = vmul.f32 %v170, %v15
  %v225 = vmul.f32 %v174, %v16
  %v226 = vmul.f32 %v178, %v17
  %v227 = vmul.f32 %v182, %v18
  %v228 = vmul.f32 %v186, %v19
  %v229 = vmul.f32 %v190, %v20
  %v230 = vmul.f32 %v194, %v21
  %v231 = vmul.f32 %v198, %v22
  %v232 = vmul.f32 %v202, %v23
  %v233 = vmul.f32 %v206, %v24
  %v234 = vmul.f32 %v210, %v25
  %235 = vset.pattern.permute.xlu0 1
  %236 = vperm.xlu0 %235, %v26
  %v237 = vpop.permute.xlu0 %236
  %v239 = vmul.f32 %v237, %v14
  %v240 = vmul.f32 %v237, %v15
  %v241 = vmul.f32 %v237, %v16
  %v242 = vmul.f32 %v237, %v17
  %v243 = vmul.f32 %v237, %v18
  %v244 = vmul.f32 %v237, %v19
  %v245 = vmul.f32 %v237, %v20
  %v246 = vmul.f32 %v237, %v21
  %v247 = vmul.f32 %v237, %v22
  %v248 = vmul.f32 %v237, %v23
  %v249 = vmul.f32 %v237, %v24
  %v250 = vmul.f32 %v237, %v25
  %v251 = vsub.f32 %v223, %v239
  %v252 = vsub.f32 %v224, %v240
  %v253 = vsub.f32 %v225, %v241
  %v254 = vsub.f32 %v226, %v242
  %v255 = vsub.f32 %v227, %v243
  %v256 = vsub.f32 %v228, %v244
  %v257 = vsub.f32 %v229, %v245
  %v258 = vsub.f32 %v230, %v246
  %v259 = vsub.f32 %v231, %v247
  %v260 = vsub.f32 %v232, %v248
  %v261 = vsub.f32 %v233, %v249
  %v262 = vsub.f32 %v234, %v250
  %v263 = vand.u32 2147483647, %v251
  %v264 = vand.u32 2147483647, %v252
  %v265 = vand.u32 2147483647, %v253
  %v266 = vand.u32 2147483647, %v254
  %v267 = vand.u32 2147483647, %v255
  %v268 = vand.u32 2147483647, %v256
  %v269 = vand.u32 2147483647, %v257
  %v270 = vand.u32 2147483647, %v258
  %v271 = vand.u32 2147483647, %v259
  %v272 = vand.u32 2147483647, %v260
  %v273 = vand.u32 2147483647, %v261
  %v274 = vand.u32 2147483647, %v262
  %v275 = vadd.f32 %v145, %v263
  %v276 = vadd.f32 %v146, %v264
  %v277 = vadd.f32 %v147, %v265
  %v278 = vadd.f32 %v148, %v266
  %v279 = vadd.f32 %v149, %v267
  %v280 = vadd.f32 %v150, %v268
  %v281 = vadd.f32 %v151, %v269
  %v282 = vadd.f32 %v152, %v270
  %v283 = vadd.f32 %v153, %v271
  %v284 = vadd.f32 %v154, %v272
  %v285 = vadd.f32 %v155, %v273
  %v286 = vadd.f32 %v156, %v274
  %s287 = scalar_lea.vmem %s1, 2
  %v288 = vld [vmem:[%s287] ss:$4 sm:$0xff]
  %s289 = scalar_lea.vmem %s1, 34
  %v290 = vld [vmem:[%s289] ss:$4 sm:$0xf]
  %v293 = vlaneseq
  %v294 = vshrl.u32 %v293, 7
  %v295 = vsub.s32 0, %v294
  %v296 = vrot.slane %v288, %v295
  %v297 = vlaneseq
  %v298 = vshrl.u32 %v297, 7
  %v299 = vsub.s32 1, %v298
  %v300 = vrot.slane %v288, %v299
  %v301 = vlaneseq
  %v302 = vshrl.u32 %v301, 7
  %v303 = vsub.s32 2, %v302
  %v304 = vrot.slane %v288, %v303
  %v305 = vlaneseq
  %v306 = vshrl.u32 %v305, 7
  %v307 = vsub.s32 3, %v306
  %v308 = vrot.slane %v288, %v307
  %v309 = vlaneseq
  %v310 = vshrl.u32 %v309, 7
  %v311 = vsub.s32 4, %v310
  %v312 = vrot.slane %v288, %v311
  %v313 = vlaneseq
  %v314 = vshrl.u32 %v313, 7
  %v315 = vsub.s32 5, %v314
  %v316 = vrot.slane %v288, %v315
  %v317 = vlaneseq
  %v318 = vshrl.u32 %v317, 7
  %v319 = vsub.s32 6, %v318
  %v320 = vrot.slane %v288, %v319
  %v321 = vlaneseq
  %v322 = vshrl.u32 %v321, 7
  %v323 = vsub.s32 7, %v322
  %v324 = vrot.slane %v288, %v323
  %v325 = vlaneseq
  %v326 = vshrl.u32 %v325, 7
  %v327 = vsub.s32 0, %v326
  %v328 = vrot.slane %v290, %v327
  %v329 = vlaneseq
  %v330 = vshrl.u32 %v329, 7
  %v331 = vsub.s32 1, %v330
  %v332 = vrot.slane %v290, %v331
  %v333 = vlaneseq
  %v334 = vshrl.u32 %v333, 7
  %v335 = vsub.s32 2, %v334
  %v336 = vrot.slane %v290, %v335
  %v337 = vlaneseq
  %v338 = vshrl.u32 %v337, 7
  %v339 = vsub.s32 3, %v338
  %v340 = vrot.slane %v290, %v339
  %v353 = vmul.f32 %v296, %v14
  %v354 = vmul.f32 %v300, %v15
  %v355 = vmul.f32 %v304, %v16
  %v356 = vmul.f32 %v308, %v17
  %v357 = vmul.f32 %v312, %v18
  %v358 = vmul.f32 %v316, %v19
  %v359 = vmul.f32 %v320, %v20
  %v360 = vmul.f32 %v324, %v21
  %v361 = vmul.f32 %v328, %v22
  %v362 = vmul.f32 %v332, %v23
  %v363 = vmul.f32 %v336, %v24
  %v364 = vmul.f32 %v340, %v25
  %365 = vset.pattern.permute.xlu0 2
  %366 = vperm.xlu0 %365, %v26
  %v367 = vpop.permute.xlu0 %366
  %v369 = vmul.f32 %v367, %v14
  %v370 = vmul.f32 %v367, %v15
  %v371 = vmul.f32 %v367, %v16
  %v372 = vmul.f32 %v367, %v17
  %v373 = vmul.f32 %v367, %v18
  %v374 = vmul.f32 %v367, %v19
  %v375 = vmul.f32 %v367, %v20
  %v376 = vmul.f32 %v367, %v21
  %v377 = vmul.f32 %v367, %v22
  %v378 = vmul.f32 %v367, %v23
  %v379 = vmul.f32 %v367, %v24
  %v380 = vmul.f32 %v367, %v25
  %v381 = vsub.f32 %v353, %v369
  %v382 = vsub.f32 %v354, %v370
  %v383 = vsub.f32 %v355, %v371
  %v384 = vsub.f32 %v356, %v372
  %v385 = vsub.f32 %v357, %v373
  %v386 = vsub.f32 %v358, %v374
  %v387 = vsub.f32 %v359, %v375
  %v388 = vsub.f32 %v360, %v376
  %v389 = vsub.f32 %v361, %v377
  %v390 = vsub.f32 %v362, %v378
  %v391 = vsub.f32 %v363, %v379
  %v392 = vsub.f32 %v364, %v380
  %v393 = vand.u32 2147483647, %v381
  %v394 = vand.u32 2147483647, %v382
  %v395 = vand.u32 2147483647, %v383
  %v396 = vand.u32 2147483647, %v384
  %v397 = vand.u32 2147483647, %v385
  %v398 = vand.u32 2147483647, %v386
  %v399 = vand.u32 2147483647, %v387
  %v400 = vand.u32 2147483647, %v388
  %v401 = vand.u32 2147483647, %v389
  %v402 = vand.u32 2147483647, %v390
  %v403 = vand.u32 2147483647, %v391
  %v404 = vand.u32 2147483647, %v392
  %v405 = vadd.f32 %v275, %v393
  %v406 = vadd.f32 %v276, %v394
  %v407 = vadd.f32 %v277, %v395
  %v408 = vadd.f32 %v278, %v396
  %v409 = vadd.f32 %v279, %v397
  %v410 = vadd.f32 %v280, %v398
  %v411 = vadd.f32 %v281, %v399
  %v412 = vadd.f32 %v282, %v400
  %v413 = vadd.f32 %v283, %v401
  %v414 = vadd.f32 %v284, %v402
  %v415 = vadd.f32 %v285, %v403
  %v416 = vadd.f32 %v286, %v404
  %v417 = vadd.f32 %v405, %v406
  %v418 = vadd.f32 %v417, %v407
  %v419 = vadd.f32 %v418, %v408
  %v420 = vadd.f32 %v419, %v409
  %v421 = vadd.f32 %v420, %v410
  %v422 = vadd.f32 %v421, %v411
  %v423 = vadd.f32 %v422, %v412
  %v424 = vadd.f32 %v423, %v413
  %v425 = vadd.f32 %v424, %v414
  %v426 = vadd.f32 %v425, %v415
  %v427 = vadd.f32 %v426, %v416
  %428 = vadd.xlane.f32.xlu0 %v427
  %v429 = vpop.xlane.xlu0 %428
  %vm430 = vcmask 7168
  %431 = vst.msk [vmem:[%s3] sm:$0xff] %vm430, %v429
  // Predicated region
  $region14: #{render_loss_stage0.5} parent=0 // pred_check
    _
  $region15: #{render_loss_stage0.5} parent=0 // pred_check_branch
    %433 = sbr.rel (0) target = $region17
  $region16: #{render_loss_stage0.5} parent=0 // pred_region
    _
  $region17: #{render_loss_stage0.5} parent=0 // pred_fallthru
    _
  // Predicated region
  $region18: #{render_loss_stage0.5} parent=0 // pred_check
    _
  $region19: #{render_loss_stage0.5} parent=0 // pred_check_branch
    %435 = sbr.rel (0) target = $region21
  $region20: #{render_loss_stage0.5} parent=0 // pred_region
    _
  $region21: #{render_loss_stage0.5} parent=0 // pred_fallthru
    _

// kernel: render_loss_stage0.3
$region0: #{render_loss_stage0.3}
  #allocation0 [shape = 'u32[]', space=smem, size = 0x4, offset = 0x4, fixed_abs, tag = 'smem constant byte address 0x4 - core index']
  #allocation1 [shape = 'u32[144,128]{1,0:T(1,128)}', space=vmem, size = 0x12000, scoped, tag = 'internal scratch']
  %s0 = inlined_call_operand.vmem [shape: f32[40,128], index: 0, kind: input, shape index: {}]
  %s1 = inlined_call_operand.vmem [shape: f32[40,128], index: 1, kind: input, shape index: {}]
  %s2 = inlined_call_operand.vmem [shape: f32[40,128], index: 2, kind: input, shape index: {}]
  %s3 = inlined_call_operand.vmem [shape: f32[40,128], index: 3, kind: input, shape index: {}]
  %s4 = inlined_call_operand.vmem [shape: f32[1,1,128], index: 4, kind: output, shape index: {}]
  %s5 = sld [smem:[#allocation0]]
  $region26: #{render_loss_stage0.3} parent=0
    _
  %s7 = ssub.s32 1, %s5
  %s8 = scalar_select 0, %s7, %s5
  // Predicated region
  $region2: #{render_loss_stage0.3} parent=0 // pred_check
    _
  $region3: #{render_loss_stage0.3} parent=0 // pred_check_branch
    %10 = sbr.rel (0) target = $region5
  $region4: #{render_loss_stage0.3} parent=0 // pred_region
    _
  $region5: #{render_loss_stage0.3} parent=0 // pred_fallthru
    _
  // Predicated region
  $region6: #{render_loss_stage0.3} parent=0 // pred_check
    _
  $region7: #{render_loss_stage0.3} parent=0 // pred_check_branch
    %12 = sbr.rel (0) target = $region9
  $region8: #{render_loss_stage0.3} parent=0 // pred_region
    _
  $region9: #{render_loss_stage0.3} parent=0 // pred_fallthru
    _
  // Predicated region
  $region10: #{render_loss_stage0.3} parent=0 // pred_check
    _
  $region11: #{render_loss_stage0.3} parent=0 // pred_check_branch
    %14 = sbr.rel (0) target = $region13
  $region12: #{render_loss_stage0.3} parent=0 // pred_region
    _
  $region13: #{render_loss_stage0.3} parent=0 // pred_fallthru
    _
  // Predicated region
  $region14: #{render_loss_stage0.3} parent=0 // pred_check
    _
  $region15: #{render_loss_stage0.3} parent=0 // pred_check_branch
    %16 = sbr.rel (0) target = $region17
  $region16: #{render_loss_stage0.3} parent=0 // pred_region
    _
  $region17: #{render_loss_stage0.3} parent=0 // pred_fallthru
    _
  %v17 = vld [vmem:[%s0] sm:$0xff]
  %v18 = vld [vmem:[%s0 + $0x8] sm:$0xff]
  %v19 = vld [vmem:[%s0 + $0x10] sm:$0xff]
  %v20 = vld [vmem:[%s0 + $0x18] sm:$0xff]
  %v21 = vld [vmem:[%s0 + $0x20] sm:$0xff]
  %v22 = vld [vmem:[%s2] sm:$0xff]
  %v23 = vld [vmem:[%s2 + $0x8] sm:$0xff]
  %v24 = vld [vmem:[%s2 + $0x10] sm:$0xff]
  %v25 = vld [vmem:[%s2 + $0x18] sm:$0xff]
  %v26 = vld [vmem:[%s2 + $0x20] sm:$0xff]
  %v27 = vmul.f32 %v17, %v22
  %v28 = vmul.f32 %v18, %v23
  %v29 = vmul.f32 %v19, %v24
  %v30 = vmul.f32 %v20, %v25
  %v31 = vmul.f32 %v21, %v26
  %v32 = vld [vmem:[%s1] sm:$0xff]
  %v33 = vld [vmem:[%s1 + $0x8] sm:$0xff]
  %v34 = vld [vmem:[%s1 + $0x10] sm:$0xff]
  %v35 = vld [vmem:[%s1 + $0x18] sm:$0xff]
  %v36 = vld [vmem:[%s1 + $0x20] sm:$0xff]
  %v37 = vld [vmem:[%s3] sm:$0xff]
  %v38 = vld [vmem:[%s3 + $0x8] sm:$0xff]
  %v39 = vld [vmem:[%s3 + $0x10] sm:$0xff]
  %v40 = vld [vmem:[%s3 + $0x18] sm:$0xff]
  %v41 = vld [vmem:[%s3 + $0x20] sm:$0xff]
  %v42 = vmul.f32 %v32, %v37
  %v43 = vmul.f32 %v33, %v38
  %v44 = vmul.f32 %v34, %v39
  %v45 = vmul.f32 %v35, %v40
  %v46 = vmul.f32 %v36, %v41
  %v47 = vsub.f32 %v27, %v42
  %v48 = vsub.f32 %v28, %v43
  %v49 = vsub.f32 %v29, %v44
  %v50 = vsub.f32 %v30, %v45
  %v51 = vsub.f32 %v31, %v46
  %v52 = vand.u32 2147483647, %v47
  %v53 = vand.u32 2147483647, %v48
  %v54 = vand.u32 2147483647, %v49
  %v55 = vand.u32 2147483647, %v50
  %v56 = vand.u32 2147483647, %v51
  %v57 = vadd.f32 %v27, 1.0
  %v58 = vadd.f32 %v28, 1.0
  %v59 = vadd.f32 %v29, 1.0
  %v60 = vadd.f32 %v30, 1.0
  %v61 = vadd.f32 %v31, 1.0
  %v62 = vadd.f32 %v42, 1.0
  %v63 = vadd.f32 %v43, 1.0
  %v64 = vadd.f32 %v44, 1.0
  %v65 = vadd.f32 %v45, 1.0
  %v66 = vadd.f32 %v46, 1.0
  %v67 = vmul.f32 %v57, %v62
  %v68 = vmul.f32 %v58, %v63
  %v69 = vmul.f32 %v59, %v64
  %v70 = vmul.f32 %v60, %v65
  %v71 = vmul.f32 %v61, %v66
  %v72 = vrcp.pop %v67
  %v73 = vmul.f32 %v52, %v72
  %v74 = vrcp.pop %v68
  %v75 = vmul.f32 %v53, %v74
  %v76 = vrcp.pop %v69
  %v77 = vmul.f32 %v54, %v76
  %v78 = vrcp.pop %v70
  %v79 = vmul.f32 %v55, %v78
  %v80 = vrcp.pop %v71
  %v81 = vmul.f32 %v56, %v80
  %v82 = vadd.f32 %v73, %v75
  %v83 = vadd.f32 %v82, %v77
  %v84 = vadd.f32 %v83, %v79
  %v85 = vadd.f32 %v84, %v81
  %v86 = vrot.slane %v85, 4
  %v87 = vadd.f32 %v85, %v86
  %v88 = vrot.slane %v87, 2
  %v89 = vadd.f32 %v87, %v88
  %v90 = vrot.slane %v89, 1
  %v91 = vadd.f32 %v89, %v90
  %92 = vst [vmem:[%s4] sm:$0x1] %v91
  // Predicated region
  $region18: #{render_loss_stage0.3} parent=0 // pred_check
    _
  $region19: #{render_loss_stage0.3} parent=0 // pred_check_branch
    %94 = sbr.rel (0) target = $region21
  $region20: #{render_loss_stage0.3} parent=0 // pred_region
    _
  $region21: #{render_loss_stage0.3} parent=0 // pred_fallthru
    _
  // Predicated region
  $region22: #{render_loss_stage0.3} parent=0 // pred_check
    _
  $region23: #{render_loss_stage0.3} parent=0 // pred_check_branch
    %96 = sbr.rel (0) target = $region25
  $region24: #{render_loss_stage0.3} parent=0 // pred_region
    _
  $region25: #{render_loss_stage0.3} parent=0 // pred_fallthru
    _

</llo_original>
